<compile_context>
chip_gen: v7x
topology: tpu7x:2x2x1
jax: 0.10.0
libtpu: 0.0.40
codegen_flags: <defaults>
</compile_context>

<pallas_src>
import math

import numpy as np
import jax
import jax.numpy as jnp
from jax import lax
from jax.experimental import pallas as pl
from jax.experimental.pallas import tpu as pltpu


def _cdiv(a, b):
    return -(-a // b)


def _round_up(x, m):
    return _cdiv(x, m) * m


def _upsample_kernel(x_ref, g_ref, o_ref):
    # x_ref: (TM, k*V_in), g_ref: (k*V_in, k*V_out) block-diag one-hot,
    # o_ref: (TM, k*V_out).  HIGHEST precision => full-f32 multi-pass matmul,
    # so the one-hot gather is bit-exact for f32 inputs.
    o_ref[...] = jnp.dot(
        x_ref[...],
        g_ref[...],
        preferred_element_type=jnp.float32,
        precision=lax.Precision.HIGHEST,
    ).astype(o_ref.dtype)


def _build_mapping(parts, v_in, v_out):
    """joint -> part index (later parts win on overlap, like the torch loop)."""
    mapping = np.full((v_out,), -1, dtype=np.int64)
    for i, p in enumerate(parts):
        for j in p:
            mapping[j] = i
    # Intentional restriction vs torch (which leaves uncovered joints
    # uninitialized): require full coverage.
    assert (mapping >= 0).all(), "graph.part must cover every output joint"
    assert mapping.max() < v_in
    return mapping


def _choose_fold(M, V, V_out, itemsize):
    """Lane-fold factor k (multiple of the minimal 128-lane fold)."""
    k_base = 128 // math.gcd(V_out, 128)          # minimal k for 128-lane output
    # Target 512-1024 output lanes (k_base*V_out is already a multiple of 128).
    m_target = max(1, 1024 // (k_base * V_out))
    # Cap arithmetic intensity (flops/byte) at ~64 so even v5e stays HBM-bound:
    #   intensity = 2*k*V*V_out / ((V + V_out) * itemsize)
    k_int_cap = max(1, int(64 * (V + V_out) * itemsize / (2 * V * V_out)))
    # Cap the selection matrix G = (k*V, k*V_out) at ~2 MiB for v7x VMEM.
    k_g_cap = max(1, math.isqrt((2 * 1024 * 1024) // max(1, V * V_out * itemsize)))
    m_cap = max(1, min(m_target, k_int_cap // k_base, k_g_cap // k_base))
    # Prefer the largest fold that divides M (no padding needed).
    for m in range(m_cap, 0, -1):
        k = k_base * m
        if M % k == 0:
            return k, False
    # No divisor found: use the widest fold and pad the remainder rows.
    return k_base * m_cap, True


def graph_upsample(x, parts):
    """Pallas implementation of GraphUpsample.forward.

    x: (N, C, T, V) with V == len(parts); output last dim = sum(len(p)).
    """
    N, C, T, V = x.shape
    assert V == len(parts), "input joint dim must equal number of parts"
    # TODO(synk): integer/bool inputs need a non-MXU lane-gather path; the
    # one-hot MXU gather is float-only by construction.
    assert jnp.issubdtype(x.dtype, jnp.floating), "float dtypes only"

    V_out = sum(len(p) for p in parts)
    mapping = _build_mapping(parts, V, V_out)
    itemsize = np.dtype(x.dtype).itemsize

    M = N * C * T

    # ---- lane folding -------------------------------------------------------
    k, need_pad = _choose_fold(M, V, V_out, itemsize)
    kV, kVo = k * V, k * V_out
    M_pad = _round_up(M, k)
    M_rows = M_pad // k

    # ---- compile-time block-diagonal one-hot selection matrix ---------------
    G_small = np.zeros((V, V_out), dtype=np.float32)
    G_small[mapping, np.arange(V_out)] = 1.0
    G_np = np.zeros((kV, kVo), dtype=np.float32)
    for b in range(k):
        G_np[b * V:(b + 1) * V, b * V_out:(b + 1) * V_out] = G_small
    G = jnp.asarray(G_np, dtype=x.dtype)

    xf = x.reshape(M, V)
    if need_pad:
        # Rare path: pad remainder rows instead of collapsing to a k=1 layout
        # (which would make every store a masked 64 B vst).
        xf = jnp.pad(xf, ((0, M_pad - M), (0, 0)))
    xm = xf.reshape(M_rows, kV)  # free reshape: memory layout unchanged

    # ---- row tile: as big as an ~8 MiB in+out block budget allows -----------
    sub = max(8, 32 // itemsize)               # sublane pack (8 f32, 16 bf16)
    in_row_b = _round_up(kV, 128) * itemsize   # VMEM lane-padded input row
    out_row_b = kVo * itemsize                 # output already 128-lane dense
    pair_budget = 8 * 1024 * 1024
    TM = max(sub, (pair_budget // (in_row_b + out_row_b)) // sub * sub)
    if TM >= M_rows:
        TM = M_rows                            # single full block (allowed)
    else:
        # v7x shards the 'parallel' axis across 2 TCs: prefer an even step
        # count (cost on single-TC v5e/v6e is ~0.35 us/extra step, negligible).
        if _cdiv(M_rows, TM) % 2 == 1:
            tm2 = TM
            while tm2 > sub and _cdiv(M_rows, tm2) % 2 == 1:
                tm2 -= sub
            if _cdiv(M_rows, tm2) % 2 == 0:
                TM = tm2

    grid = (_cdiv(M_rows, TM),)

    # ---- explicit scoped-VMEM budget (double-buffered tiles + G) ------------
    g_bytes = kV * kVo * itemsize
    vmem_need = 2 * TM * (in_row_b + out_row_b) + 2 * g_bytes
    vmem_limit = min(max(int(vmem_need) + (4 << 20), 16 << 20), 48 << 20)

    cost = pl.CostEstimate(
        flops=2 * M_rows * kV * kVo,
        bytes_accessed=(M_rows * kV + kV * kVo + M_rows * kVo) * itemsize,
        transcendentals=0,
    )

    out_fold = pl.pallas_call(
        _upsample_kernel,
        out_shape=jax.ShapeDtypeStruct((M_rows, kVo), x.dtype),
        grid=grid,
        in_specs=[
            pl.BlockSpec((TM, kV), lambda i: (i, 0)),   # rows tiled, lanes full
            pl.BlockSpec((kV, kVo), lambda i: (0, 0)),  # G: VMEM-resident
        ],
        out_specs=pl.BlockSpec((TM, kVo), lambda i: (i, 0)),
        compiler_params=pltpu.CompilerParams(
            dimension_semantics=("parallel",),
            vmem_limit_bytes=vmem_limit,
        ),
        cost_estimate=cost,
    )(xm, G)

    out = out_fold.reshape(M_pad, V_out)
    if need_pad:
        out = out[:M]
    return out.reshape(N, C, T, V_out)


if __name__ == "__main__":
    # Small synthetic "graph": 5 body parts covering 16 joints.
    parts = [[0, 1, 2, 3], [4, 5], [6, 7, 8], [9, 10, 11, 12], [13, 14, 15]]
    V_in = len(parts)                       # 5
    V_out = sum(len(p) for p in parts)      # 16

    mapping = np.zeros((V_out,), dtype=np.int32)
    for i, p in enumerate(parts):
        for j in p:
            mapping[j] = i
    mapping = jnp.asarray(mapping)

    key = jax.random.PRNGKey(0)

    # Main case: M = N*C*T divisible by the fold factor (no padding path).
    N, C, T = 2, 4, 16
    x = jax.random.normal(key, (N, C, T, V_in), dtype=jnp.float32)
    out = jax.block_until_ready(graph_upsample(x, parts))
    ref = x[..., mapping]
    assert out.shape == (N, C, T, V_out), out.shape
    np.testing.assert_allclose(np.asarray(out), np.asarray(ref), rtol=0, atol=0)

    # Remainder case: exercises the pad-and-slice path (M % k != 0).
    N2, C2, T2 = 1, 3, 7
    x2 = jax.random.normal(jax.random.PRNGKey(1), (N2, C2, T2, V_in),
                           dtype=jnp.float32)
    out2 = jax.block_until_ready(graph_upsample(x2, parts))
    ref2 = x2[..., mapping]
    assert out2.shape == (N2, C2, T2, V_out), out2.shape
    np.testing.assert_allclose(np.asarray(out2), np.asarray(ref2), rtol=0, atol=0)

    print("KERNEL_OK")
</pallas_src>

<mosaic_0001>
module attributes {stable_mosaic.version = 11 : i64} {
  func.func @_upsample_kernel(%arg0: i32, %arg1: memref<4x160xf32, #tpu.memory_space<vmem>>, %arg2: memref<160x512xf32, #tpu.memory_space<vmem>>, %arg3: memref<4x512xf32, #tpu.memory_space<vmem>>) attributes {dimension_semantics = [#tpu.dimension_semantics<parallel>], iteration_bounds = array<i64: 1>, scalar_prefetch = 0 : i64, scratch_operands = 0 : i64, tpu.core_type = #tpu.core_type<tc>, window_params = [{transform_indices = @transform_0, window_bounds = array<i64: 4, 160>}, {pipeline_mode = #tpu.pipeline_mode<synchronous>, transform_indices = @transform_1, window_bounds = array<i64: 160, 512>}, {transform_indices = @transform_2, window_bounds = array<i64: 4, 512>}]} {
    %c0 = arith.constant 0 : index
    %c0_0 = arith.constant 0 : index
    %0 = vector.load %arg1[%c0, %c0_0] : memref<4x160xf32, #tpu.memory_space<vmem>>, vector<4x160xf32>
    %c0_1 = arith.constant 0 : index
    %c0_2 = arith.constant 0 : index
    %1 = vector.load %arg2[%c0_1, %c0_2] : memref<160x512xf32, #tpu.memory_space<vmem>>, vector<160x512xf32>
    %cst = arith.constant dense<0.000000e+00> : vector<4x512xf32>
    %2 = tpu.matmul %0, %1, %cst {dimension_numbers = #tpu.dot_dimension_numbers<[1], [0], [0], [1], [0, 0, 1, 1], [], []>, precision = #tpu.contract_precision<fp32>} : vector<4x160xf32>, vector<160x512xf32>, vector<4x512xf32> -> vector<4x512xf32>
    %c0_3 = arith.constant 0 : index
    %c0_4 = arith.constant 0 : index
    %3 = vector.load %arg3[%c0_3, %c0_4] : memref<4x512xf32, #tpu.memory_space<vmem>>, vector<4x512xf32>
    tpu.vector_store %arg3[%c0_3, %c0_4], %2 {strides = array<i32>} : memref<4x512xf32, #tpu.memory_space<vmem>>, vector<4x512xf32>,
    return
  }
  func.func @transform_0(%arg0: i32) -> (i32, i32) {
    %c0_i32 = arith.constant 0 : i32
    %c0_i32_0 = arith.constant 0 : i32
    return %arg0, %c0_i32 : i32, i32
  }
  func.func @transform_1(%arg0: i32) -> (i32, i32) {
    %c0_i32 = arith.constant 0 : i32
    %c0_i32_0 = arith.constant 0 : i32
    %c0_i32_1 = arith.constant 0 : i32
    return %c0_i32, %c0_i32_0 : i32, i32
  }
  func.func @transform_2(%arg0: i32) -> (i32, i32) {
    %c0_i32 = arith.constant 0 : i32
    %c0_i32_0 = arith.constant 0 : i32
    return %arg0, %c0_i32 : i32, i32
  }
}

</mosaic_0001>

<llo_original>
// kernel: tpu_custom_call.1
$region0: #{tpu_custom_call.1}
  #allocation0 [shape = 'u32[]', space=smem, size = 0x4, offset = 0x4, fixed_abs, tag = 'smem constant byte address 0x4 - core index']
  #allocation1 [shape = 'u32[144,128]{1,0:T(1,128)}', space=vmem, size = 0x12000, scoped, tag = 'internal scratch']
  %s0 = inlined_call_operand.hbm [shape: f32[4,160], index: 0, kind: input, shape index: {}]
  %s1 = inlined_call_operand.hbm [shape: f32[160,512], index: 1, kind: input, shape index: {}]
  %s2 = inlined_call_operand.hbm [shape: f32[4,512], index: 2, kind: output, shape index: {}]
  %s3 = sld [smem:[#allocation0]]
  $region26: #{tpu_custom_call.1} parent=0
    _
  %s5 = ssub.s32 1, %s3
  %s6 = scalar_select 0, %s5, %s3
  $region1: #{tpu_custom_call.1} parent=0
    #allocation2 [shape = 'u8[4096]{0}', space=vmem, size = 0x1000, scoped, tag = 'input window, operand 0, single buffered']
    #allocation3 [shape = 's32[1]{0}', space=sflag, size = 0x4, scoped, tag = 'scoped memory for tpu_custom_call.1']
    #allocation4 [shape = 's32[1]{0}', space=sflag, size = 0x4, scoped, tag = 'scoped memory for tpu_custom_call.1']
    #allocation5 [shape = 'u8[327680]{0}', space=vmem, size = 0x50000, scoped, tag = 'input window, operand 1, single buffered']
    #allocation6 [shape = 's32[1]{0}', space=sflag, size = 0x4, scoped, tag = 'scoped memory for tpu_custom_call.1']
    #allocation7 [shape = 'u8[8192]{0}', space=vmem, size = 0x2000, scoped, tag = 'output window, operand 0, single buffered']
    %7 = vsyncpa [#allocation3], 0
    %8 = vsyncpa [#allocation6], 0
    %9 = vsyncpa [#allocation4], 0
    // Predicated region
    $region2: #{tpu_custom_call.1} parent=1 // pred_check
      _
    $region3: #{tpu_custom_call.1} parent=1 // pred_check_branch
      %11 = sbr.rel (0) target = $region5
    $region4: #{tpu_custom_call.1} parent=1 // pred_region
      %s13 = ssub.s32 128, 128
      %14 = vsyncadd [#allocation3], %s13
      %s16 = sshll.u32 [#allocation2], 4
      %s17 = int_to_ptr.vmem [resolvable:$true] %s16
      %19 = dma.hbm_to_vmem [thread:$0]  %s0, 128, %s17, [#allocation3]
    $region5: #{tpu_custom_call.1} parent=1 // pred_fallthru
      _
    // Predicated region
    $region6: #{tpu_custom_call.1} parent=1 // pred_check
      _
    $region7: #{tpu_custom_call.1} parent=1 // pred_check_branch
      %21 = sbr.rel (0) target = $region9
    $region8: #{tpu_custom_call.1} parent=1 // pred_region
      %s23 = ssub.s32 10240, 10240
      %24 = vsyncadd [#allocation6], %s23
      %s25 = sshll.u32 [#allocation5], 4
      %s26 = int_to_ptr.vmem [resolvable:$true] %s25
      %31 = dma.hbm_to_vmem [thread:$0]  %s1, 10240, %s26, [#allocation6], 512, 512, 32
    $region9: #{tpu_custom_call.1} parent=1 // pred_fallthru
      _
    // Predicated region
    $region10: #{tpu_custom_call.1} parent=1 // pred_check
      _
    $region11: #{tpu_custom_call.1} parent=1 // pred_check_branch
      %33 = sbr.rel (0) target = $region13
    $region12: #{tpu_custom_call.1} parent=1 // pred_region
      %34 = dma.done [#allocation3], 128
    $region13: #{tpu_custom_call.1} parent=1 // pred_fallthru
      _
    // Predicated region
    $region14: #{tpu_custom_call.1} parent=1 // pred_check
      _
    $region15: #{tpu_custom_call.1} parent=1 // pred_check_branch
      %36 = sbr.rel (0) target = $region17
    $region16: #{tpu_custom_call.1} parent=1 // pred_region
      %37 = dma.done [#allocation6], 10240
    $region17: #{tpu_custom_call.1} parent=1 // pred_fallthru
      _
    %v38 = vld [vmem:[#allocation2] sm:$0xff]
    %v39 = vld [vmem:[#allocation5] sm:$0xff]
    %v40 = vld [vmem:[#allocation5 + $0x8] sm:$0xff]
    %v41 = vld [vmem:[#allocation5 + $0x10] sm:$0xff]
    %v42 = vld [vmem:[#allocation5 + $0x18] sm:$0xff]
    %v43 = vld [vmem:[#allocation5 + $0x20] sm:$0xff]
    %v44 = vld [vmem:[#allocation5 + $0x28] sm:$0xff]
    %v45 = vld [vmem:[#allocation5 + $0x30] sm:$0xff]
    %v46 = vld [vmem:[#allocation5 + $0x38] sm:$0xff]
    %v47 = vld [vmem:[#allocation5 + $0x40] sm:$0xff]
    %v48 = vld [vmem:[#allocation5 + $0x48] sm:$0xff]
    %v49 = vld [vmem:[#allocation5 + $0x50] sm:$0xff]
    %v50 = vld [vmem:[#allocation5 + $0x58] sm:$0xff]
    %v51 = vld [vmem:[#allocation5 + $0x60] sm:$0xff]
    %v52 = vld [vmem:[#allocation5 + $0x68] sm:$0xff]
    %v53 = vld [vmem:[#allocation5 + $0x70] sm:$0xff]
    %v54 = vld [vmem:[#allocation5 + $0x78] sm:$0xff]
    %v55 = vld [vmem:[#allocation5 + $0x80] sm:$0xff]
    %v56 = vld [vmem:[#allocation5 + $0x88] sm:$0xff]
    %v57 = vld [vmem:[#allocation5 + $0x90] sm:$0xff]
    %v58 = vld [vmem:[#allocation5 + $0x98] sm:$0xff]
    %v59 = vld [vmem:[#allocation5 + $0xa0] sm:$0xff]
    %v60 = vld [vmem:[#allocation5 + $0xa8] sm:$0xff]
    %v61 = vld [vmem:[#allocation5 + $0xb0] sm:$0xff]
    %v62 = vld [vmem:[#allocation5 + $0xb8] sm:$0xff]
    %v63 = vld [vmem:[#allocation5 + $0xc0] sm:$0xff]
    %v64 = vld [vmem:[#allocation5 + $0xc8] sm:$0xff]
    %v65 = vld [vmem:[#allocation5 + $0xd0] sm:$0xff]
    %v66 = vld [vmem:[#allocation5 + $0xd8] sm:$0xff]
    %v67 = vld [vmem:[#allocation5 + $0xe0] sm:$0xff]
    %v68 = vld [vmem:[#allocation5 + $0xe8] sm:$0xff]
    %v69 = vld [vmem:[#allocation5 + $0xf0] sm:$0xff]
    %v70 = vld [vmem:[#allocation5 + $0xf8] sm:$0xff]
    %v71 = vld [vmem:[#allocation5 + $0x100] sm:$0xff]
    %v72 = vld [vmem:[#allocation5 + $0x108] sm:$0xff]
    %v73 = vld [vmem:[#allocation5 + $0x110] sm:$0xff]
    %v74 = vld [vmem:[#allocation5 + $0x118] sm:$0xff]
    %v75 = vld [vmem:[#allocation5 + $0x120] sm:$0xff]
    %v76 = vld [vmem:[#allocation5 + $0x128] sm:$0xff]
    %v77 = vld [vmem:[#allocation5 + $0x130] sm:$0xff]
    %v78 = vld [vmem:[#allocation5 + $0x138] sm:$0xff]
    %v79 = vld [vmem:[#allocation5 + $0x140] sm:$0xff]
    %v80 = vld [vmem:[#allocation5 + $0x148] sm:$0xff]
    %v81 = vld [vmem:[#allocation5 + $0x150] sm:$0xff]
    %v82 = vld [vmem:[#allocation5 + $0x158] sm:$0xff]
    %v83 = vld [vmem:[#allocation5 + $0x160] sm:$0xff]
    %v84 = vld [vmem:[#allocation5 + $0x168] sm:$0xff]
    %v85 = vld [vmem:[#allocation5 + $0x170] sm:$0xff]
    %v86 = vld [vmem:[#allocation5 + $0x178] sm:$0xff]
    %v87 = vld [vmem:[#allocation5 + $0x180] sm:$0xff]
    %v88 = vld [vmem:[#allocation5 + $0x188] sm:$0xff]
    %v89 = vld [vmem:[#allocation5 + $0x190] sm:$0xff]
    %v90 = vld [vmem:[#allocation5 + $0x198] sm:$0xff]
    %v91 = vld [vmem:[#allocation5 + $0x1a0] sm:$0xff]
    %v92 = vld [vmem:[#allocation5 + $0x1a8] sm:$0xff]
    %v93 = vld [vmem:[#allocation5 + $0x1b0] sm:$0xff]
    %v94 = vld [vmem:[#allocation5 + $0x1b8] sm:$0xff]
    %v95 = vld [vmem:[#allocation5 + $0x1c0] sm:$0xff]
    %v96 = vld [vmem:[#allocation5 + $0x1c8] sm:$0xff]
    %v97 = vld [vmem:[#allocation5 + $0x1d0] sm:$0xff]
    %v98 = vld [vmem:[#allocation5 + $0x1d8] sm:$0xff]
    %v99 = vld [vmem:[#allocation5 + $0x1e0] sm:$0xff]
    %v100 = vld [vmem:[#allocation5 + $0x1e8] sm:$0xff]
    %v101 = vld [vmem:[#allocation5 + $0x1f0] sm:$0xff]
    %v102 = vld [vmem:[#allocation5 + $0x1f8] sm:$0xff]
    %v103 = vld [vmem:[#allocation5 + $0x200] sm:$0xff]
    %v104 = vld [vmem:[#allocation5 + $0x208] sm:$0xff]
    %v105 = vld [vmem:[#allocation5 + $0x210] sm:$0xff]
    %v106 = vld [vmem:[#allocation5 + $0x218] sm:$0xff]
    %v107 = vld [vmem:[#allocation5 + $0x220] sm:$0xff]
    %v108 = vld [vmem:[#allocation5 + $0x228] sm:$0xff]
    %v109 = vld [vmem:[#allocation5 + $0x230] sm:$0xff]
    %v110 = vld [vmem:[#allocation5 + $0x238] sm:$0xff]
    %v111 = vld [vmem:[#allocation5 + $0x240] sm:$0xff]
    %v112 = vld [vmem:[#allocation5 + $0x248] sm:$0xff]
    %v113 = vld [vmem:[#allocation5 + $0x250] sm:$0xff]
    %v114 = vld [vmem:[#allocation5 + $0x258] sm:$0xff]
    %v115 = vld [vmem:[#allocation5 + $0x260] sm:$0xff]
    %v116 = vld [vmem:[#allocation5 + $0x268] sm:$0xff]
    %v117 = vld [vmem:[#allocation5 + $0x270] sm:$0xff]
    %v118 = vld [vmem:[#allocation5 + $0x278] sm:$0xff]
    %v120 = vcombine.high %v38, %v38
    %vm121 = vcmask 261120
    %v122 = vsel %vm121, %v120, 0
    %v124 = vand.u32 %v40, 4294901760
    %125 = vmatprep.subr.mxu0 %v124
    %v126 = vand.u32 %v39, 4294901760
    %127 = vmatpush1.msra.mxu0 %v126
    %v128 = vand.u32 %v44, 4294901760
    %129 = vmatprep.subr.mxu0 %v128
    %v130 = vand.u32 %v43, 4294901760
    %131 = vmatpush1.msra.mxu0 %v130
    %v132 = vand.u32 %v48, 4294901760
    %133 = vmatprep.subr.mxu0 %v132
    %v134 = vand.u32 %v47, 4294901760
    %135 = vmatpush1.msra.mxu0 %v134
    %v136 = vand.u32 %v52, 4294901760
    %137 = vmatprep.subr.mxu0 %v136
    %v138 = vand.u32 %v51, 4294901760
    %139 = vmatpush1.msra.mxu0 %v138
    %v140 = vand.u32 %v56, 4294901760
    %141 = vmatprep.subr.mxu0 %v140
    %v142 = vand.u32 %v55, 4294901760
    %143 = vmatpush1.msra.mxu0 %v142
    %v144 = vand.u32 %v60, 4294901760
    %145 = vmatprep.subr.mxu0 %v144
    %v146 = vand.u32 %v59, 4294901760
    %147 = vmatpush1.msra.mxu0 %v146
    %v148 = vand.u32 %v64, 4294901760
    %149 = vmatprep.subr.mxu0 %v148
    %v150 = vand.u32 %v63, 4294901760
    %151 = vmatpush1.msra.mxu0 %v150
    %v152 = vand.u32 %v68, 4294901760
    %153 = vmatprep.subr.mxu0 %v152
    %v154 = vand.u32 %v67, 4294901760
    %155 = vmatpush1.msra.mxu0 %v154
    %v156 = vand.u32 %v72, 4294901760
    %157 = vmatprep.subr.mxu0 %v156
    %v158 = vand.u32 %v71, 4294901760
    %159 = vmatpush1.msra.mxu0 %v158
    %v160 = vand.u32 %v76, 4294901760
    %161 = vmatprep.subr.mxu0 %v160
    %v162 = vand.u32 %v75, 4294901760
    %163 = vmatpush1.msra.mxu0 %v162
    %v164 = vand.u32 %v80, 4294901760
    %165 = vmatprep.subr.mxu0 %v164
    %v166 = vand.u32 %v79, 4294901760
    %167 = vmatpush1.msra.mxu0 %v166
    %v168 = vand.u32 %v84, 4294901760
    %169 = vmatprep.subr.mxu0 %v168
    %v170 = vand.u32 %v83, 4294901760
    %171 = vmatpush1.msra.mxu0 %v170
    %v172 = vand.u32 %v88, 4294901760
    %173 = vmatprep.subr.mxu0 %v172
    %v174 = vand.u32 %v87, 4294901760
    %175 = vmatpush1.msra.mxu0 %v174
    %v176 = vand.u32 %v92, 4294901760
    %177 = vmatprep.subr.mxu0 %v176
    %v178 = vand.u32 %v91, 4294901760
    %179 = vmatpush1.msra.mxu0 %v178
    %v180 = vand.u32 %v96, 4294901760
    %181 = vmatprep.subr.mxu0 %v180
    %v182 = vand.u32 %v95, 4294901760
    %183 = vmatpush1.msra.mxu0 %v182
    %v184 = vand.u32 %v100, 4294901760
    %185 = vmatprep.subr.mxu0 %v184
    %v186 = vand.u32 %v99, 4294901760
    %187 = vmatpush1.msra.mxu0 %v186
    %v188 = vand.u32 %v104, 4294901760
    %189 = vmatprep.subr.mxu0 %v188
    %v190 = vand.u32 %v103, 4294901760
    %191 = vmatpush1.msra.mxu0 %v190
    %v192 = vand.u32 %v108, 4294901760
    %193 = vmatprep.subr.mxu0 %v192
    %v194 = vand.u32 %v107, 4294901760
    %195 = vmatpush1.msra.mxu0 %v194
    %v196 = vand.u32 %v112, 4294901760
    %197 = vmatprep.subr.mxu0 %v196
    %v198 = vand.u32 %v111, 4294901760
    %199 = vmatpush1.msra.mxu0 %v198
    %v200 = vand.u32 %v116, 4294901760
    %201 = vmatprep.subr.mxu0 %v200
    %v202 = vand.u32 %v115, 4294901760
    %203 = vmatpush1.msra.mxu0 %v202
    %204 = vmatprep.subr.mxu0 0.0
    %205 = vmatpush1.msra.mxu0 0.0
    %206 = vmatprep.subr.mxu0 0.0
    %207 = vmatpush1.msra.mxu0 0.0
    %208 = vmatprep.subr.mxu0 0.0
    %209 = vmatpush1.msra.mxu0 0.0
    %210 = vmatprep.subr.mxu0 0.0
    %211 = vmatpush1.msra.mxu0 0.0
    %212 = vmatprep.subr.mxu0 0.0
    %213 = vmatpush1.msra.mxu0 0.0
    %214 = vmatprep.subr.mxu0 0.0
    %215 = vmatpush1.msra.mxu0 0.0
    %216 = vmatprep.subr.mxu0 0.0
    %217 = vmatpush1.msra.mxu0 0.0
    %218 = vmatprep.subr.mxu0 0.0
    %219 = vmatpush1.msra.mxu0 0.0
    %220 = vmatprep.subr.mxu0 0.0
    %221 = vmatpush1.msra.mxu0 0.0
    %222 = vmatprep.subr.mxu0 0.0
    %223 = vmatpush1.msra.mxu0 0.0
    %224 = vmatprep.subr.mxu0 0.0
    %225 = vmatpush1.msra.mxu0 0.0
    %226 = vmatprep.subr.mxu0 0.0
    %227 = vmatpush1.msra.mxu0 0.0
    %v228 = vand.u32 %v122, 4294901760
    %v229 = vsub.f32 %v122, %v228
    %v230 = vand.u32 %v229, 4294901760
    %v231 = vsub.f32 %v229, %v230
    %v232 = vand.u32 %v231, 4294901760
    %233 = vmatprep.mubr.f32.mxu0 %v232
    %v234 = vand.u32 %v38, 4294901760
    %v235 = vsub.f32 %v38, %v234
    %v236 = vand.u32 %v235, 4294901760
    %v237 = vsub.f32 %v235, %v236
    %v238 = vand.u32 %v237, 4294901760
    %239 = vmatmul.mubr.f32.gmra.mrb[0].mxu0 %v238
    %v240 = vpop.f32.mrb[0].mxu0
    %v241 = vadd.f32 0.0, %v240
    %v242 = vpop.f32.mrb[0].mxu0
    %v243 = vadd.f32 0.0, %v242
    %244 = vdwg.mxu0
    %v245 = vand.u32 %v40, 4294901760
    %v246 = vsub.f32 %v40, %v245
    %v247 = vand.u32 %v246, 4294901760
    %v248 = vsub.f32 %v246, %v247
    %v249 = vand.u32 %v248, 4294901760
    %250 = vmatprep.subr.mxu0 %v249
    %v251 = vand.u32 %v39, 4294901760
    %v252 = vsub.f32 %v39, %v251
    %v253 = vand.u32 %v252, 4294901760
    %v254 = vsub.f32 %v252, %v253
    %v255 = vand.u32 %v254, 4294901760
    %256 = vmatpush1.msra.mxu0 %v255
    %v257 = vand.u32 %v44, 4294901760
    %v258 = vsub.f32 %v44, %v257
    %v259 = vand.u32 %v258, 4294901760
    %v260 = vsub.f32 %v258, %v259
    %v261 = vand.u32 %v260, 4294901760
    %262 = vmatprep.subr.mxu0 %v261
    %v263 = vand.u32 %v43, 4294901760
    %v264 = vsub.f32 %v43, %v263
    %v265 = vand.u32 %v264, 4294901760
    %v266 = vsub.f32 %v264, %v265
    %v267 = vand.u32 %v266, 4294901760
    %268 = vmatpush1.msra.mxu0 %v267
    %v269 = vand.u32 %v48, 4294901760
    %v270 = vsub.f32 %v48, %v269
    %v271 = vand.u32 %v270, 4294901760
    %v272 = vsub.f32 %v270, %v271
    %v273 = vand.u32 %v272, 4294901760
    %274 = vmatprep.subr.mxu0 %v273
    %v275 = vand.u32 %v47, 4294901760
    %v276 = vsub.f32 %v47, %v275
    %v277 = vand.u32 %v276, 4294901760
    %v278 = vsub.f32 %v276, %v277
    %v279 = vand.u32 %v278, 4294901760
    %280 = vmatpush1.msra.mxu0 %v279
    %v281 = vand.u32 %v52, 4294901760
    %v282 = vsub.f32 %v52, %v281
    %v283 = vand.u32 %v282, 4294901760
    %v284 = vsub.f32 %v282, %v283
    %v285 = vand.u32 %v284, 4294901760
    %286 = vmatprep.subr.mxu0 %v285
    %v287 = vand.u32 %v51, 4294901760
    %v288 = vsub.f32 %v51, %v287
    %v289 = vand.u32 %v288, 4294901760
    %v290 = vsub.f32 %v288, %v289
    %v291 = vand.u32 %v290, 4294901760
    %292 = vmatpush1.msra.mxu0 %v291
    %v293 = vand.u32 %v56, 4294901760
    %v294 = vsub.f32 %v56, %v293
    %v295 = vand.u32 %v294, 4294901760
    %v296 = vsub.f32 %v294, %v295
    %v297 = vand.u32 %v296, 4294901760
    %298 = vmatprep.subr.mxu0 %v297
    %v299 = vand.u32 %v55, 4294901760
    %v300 = vsub.f32 %v55, %v299
    %v301 = vand.u32 %v300, 4294901760
    %v302 = vsub.f32 %v300, %v301
    %v303 = vand.u32 %v302, 4294901760
    %304 = vmatpush1.msra.mxu0 %v303
    %v305 = vand.u32 %v60, 4294901760
    %v306 = vsub.f32 %v60, %v305
    %v307 = vand.u32 %v306, 4294901760
    %v308 = vsub.f32 %v306, %v307
    %v309 = vand.u32 %v308, 4294901760
    %310 = vmatprep.subr.mxu0 %v309
    %v311 = vand.u32 %v59, 4294901760
    %v312 = vsub.f32 %v59, %v311
    %v313 = vand.u32 %v312, 4294901760
    %v314 = vsub.f32 %v312, %v313
    %v315 = vand.u32 %v314, 4294901760
    %316 = vmatpush1.msra.mxu0 %v315
    %v317 = vand.u32 %v64, 4294901760
    %v318 = vsub.f32 %v64, %v317
    %v319 = vand.u32 %v318, 4294901760
    %v320 = vsub.f32 %v318, %v319
    %v321 = vand.u32 %v320, 4294901760
    %322 = vmatprep.subr.mxu0 %v321
    %v323 = vand.u32 %v63, 4294901760
    %v324 = vsub.f32 %v63, %v323
    %v325 = vand.u32 %v324, 4294901760
    %v326 = vsub.f32 %v324, %v325
    %v327 = vand.u32 %v326, 4294901760
    %328 = vmatpush1.msra.mxu0 %v327
    %v329 = vand.u32 %v68, 4294901760
    %v330 = vsub.f32 %v68, %v329
    %v331 = vand.u32 %v330, 4294901760
    %v332 = vsub.f32 %v330, %v331
    %v333 = vand.u32 %v332, 4294901760
    %334 = vmatprep.subr.mxu0 %v333
    %v335 = vand.u32 %v67, 4294901760
    %v336 = vsub.f32 %v67, %v335
    %v337 = vand.u32 %v336, 4294901760
    %v338 = vsub.f32 %v336, %v337
    %v339 = vand.u32 %v338, 4294901760
    %340 = vmatpush1.msra.mxu0 %v339
    %v341 = vand.u32 %v72, 4294901760
    %v342 = vsub.f32 %v72, %v341
    %v343 = vand.u32 %v342, 4294901760
    %v344 = vsub.f32 %v342, %v343
    %v345 = vand.u32 %v344, 4294901760
    %346 = vmatprep.subr.mxu0 %v345
    %v347 = vand.u32 %v71, 4294901760
    %v348 = vsub.f32 %v71, %v347
    %v349 = vand.u32 %v348, 4294901760
    %v350 = vsub.f32 %v348, %v349
    %v351 = vand.u32 %v350, 4294901760
    %352 = vmatpush1.msra.mxu0 %v351
    %v353 = vand.u32 %v76, 4294901760
    %v354 = vsub.f32 %v76, %v353
    %v355 = vand.u32 %v354, 4294901760
    %v356 = vsub.f32 %v354, %v355
    %v357 = vand.u32 %v356, 4294901760
    %358 = vmatprep.subr.mxu0 %v357
    %v359 = vand.u32 %v75, 4294901760
    %v360 = vsub.f32 %v75, %v359
    %v361 = vand.u32 %v360, 4294901760
    %v362 = vsub.f32 %v360, %v361
    %v363 = vand.u32 %v362, 4294901760
    %364 = vmatpush1.msra.mxu0 %v363
    %v365 = vand.u32 %v80, 4294901760
    %v366 = vsub.f32 %v80, %v365
    %v367 = vand.u32 %v366, 4294901760
    %v368 = vsub.f32 %v366, %v367
    %v369 = vand.u32 %v368, 4294901760
    %370 = vmatprep.subr.mxu0 %v369
    %v371 = vand.u32 %v79, 4294901760
    %v372 = vsub.f32 %v79, %v371
    %v373 = vand.u32 %v372, 4294901760
    %v374 = vsub.f32 %v372, %v373
    %v375 = vand.u32 %v374, 4294901760
    %376 = vmatpush1.msra.mxu0 %v375
    %v377 = vand.u32 %v84, 4294901760
    %v378 = vsub.f32 %v84, %v377
    %v379 = vand.u32 %v378, 4294901760
    %v380 = vsub.f32 %v378, %v379
    %v381 = vand.u32 %v380, 4294901760
    %382 = vmatprep.subr.mxu0 %v381
    %v383 = vand.u32 %v83, 4294901760
    %v384 = vsub.f32 %v83, %v383
    %v385 = vand.u32 %v384, 4294901760
    %v386 = vsub.f32 %v384, %v385
    %v387 = vand.u32 %v386, 4294901760
    %388 = vmatpush1.msra.mxu0 %v387
    %v389 = vand.u32 %v88, 4294901760
    %v390 = vsub.f32 %v88, %v389
    %v391 = vand.u32 %v390, 4294901760
    %v392 = vsub.f32 %v390, %v391
    %v393 = vand.u32 %v392, 4294901760
    %394 = vmatprep.subr.mxu0 %v393
    %v395 = vand.u32 %v87, 4294901760
    %v396 = vsub.f32 %v87, %v395
    %v397 = vand.u32 %v396, 4294901760
    %v398 = vsub.f32 %v396, %v397
    %v399 = vand.u32 %v398, 4294901760
    %400 = vmatpush1.msra.mxu0 %v399
    %v401 = vand.u32 %v92, 4294901760
    %v402 = vsub.f32 %v92, %v401
    %v403 = vand.u32 %v402, 4294901760
    %v404 = vsub.f32 %v402, %v403
    %v405 = vand.u32 %v404, 4294901760
    %406 = vmatprep.subr.mxu0 %v405
    %v407 = vand.u32 %v91, 4294901760
    %v408 = vsub.f32 %v91, %v407
    %v409 = vand.u32 %v408, 4294901760
    %v410 = vsub.f32 %v408, %v409
    %v411 = vand.u32 %v410, 4294901760
    %412 = vmatpush1.msra.mxu0 %v411
    %v413 = vand.u32 %v96, 4294901760
    %v414 = vsub.f32 %v96, %v413
    %v415 = vand.u32 %v414, 4294901760
    %v416 = vsub.f32 %v414, %v415
    %v417 = vand.u32 %v416, 4294901760
    %418 = vmatprep.subr.mxu0 %v417
    %v419 = vand.u32 %v95, 4294901760
    %v420 = vsub.f32 %v95, %v419
    %v421 = vand.u32 %v420, 4294901760
    %v422 = vsub.f32 %v420, %v421
    %v423 = vand.u32 %v422, 4294901760
    %424 = vmatpush1.msra.mxu0 %v423
    %v425 = vand.u32 %v100, 4294901760
    %v426 = vsub.f32 %v100, %v425
    %v427 = vand.u32 %v426, 4294901760
    %v428 = vsub.f32 %v426, %v427
    %v429 = vand.u32 %v428, 4294901760
    %430 = vmatprep.subr.mxu0 %v429
    %v431 = vand.u32 %v99, 4294901760
    %v432 = vsub.f32 %v99, %v431
    %v433 = vand.u32 %v432, 4294901760
    %v434 = vsub.f32 %v432, %v433
    %v435 = vand.u32 %v434, 4294901760
    %436 = vmatpush1.msra.mxu0 %v435
    %v437 = vand.u32 %v104, 4294901760
    %v438 = vsub.f32 %v104, %v437
    %v439 = vand.u32 %v438, 4294901760
    %v440 = vsub.f32 %v438, %v439
    %v441 = vand.u32 %v440, 4294901760
    %442 = vmatprep.subr.mxu0 %v441
    %v443 = vand.u32 %v103, 4294901760
    %v444 = vsub.f32 %v103, %v443
    %v445 = vand.u32 %v444, 4294901760
    %v446 = vsub.f32 %v444, %v445
    %v447 = vand.u32 %v446, 4294901760
    %448 = vmatpush1.msra.mxu0 %v447
    %v449 = vand.u32 %v108, 4294901760
    %v450 = vsub.f32 %v108, %v449
    %v451 = vand.u32 %v450, 4294901760
    %v452 = vsub.f32 %v450, %v451
    %v453 = vand.u32 %v452, 4294901760
    %454 = vmatprep.subr.mxu0 %v453
    %v455 = vand.u32 %v107, 4294901760
    %v456 = vsub.f32 %v107, %v455
    %v457 = vand.u32 %v456, 4294901760
    %v458 = vsub.f32 %v456, %v457
    %v459 = vand.u32 %v458, 4294901760
    %460 = vmatpush1.msra.mxu0 %v459
    %v461 = vand.u32 %v112, 4294901760
    %v462 = vsub.f32 %v112, %v461
    %v463 = vand.u32 %v462, 4294901760
    %v464 = vsub.f32 %v462, %v463
    %v465 = vand.u32 %v464, 4294901760
    %466 = vmatprep.subr.mxu0 %v465
    %v467 = vand.u32 %v111, 4294901760
    %v468 = vsub.f32 %v111, %v467
    %v469 = vand.u32 %v468, 4294901760
    %v470 = vsub.f32 %v468, %v469
    %v471 = vand.u32 %v470, 4294901760
    %472 = vmatpush1.msra.mxu0 %v471
    %v473 = vand.u32 %v116, 4294901760
    %v474 = vsub.f32 %v116, %v473
    %v475 = vand.u32 %v474, 4294901760
    %v476 = vsub.f32 %v474, %v475
    %v477 = vand.u32 %v476, 4294901760
    %478 = vmatprep.subr.mxu0 %v477
    %v479 = vand.u32 %v115, 4294901760
    %v480 = vsub.f32 %v115, %v479
    %v481 = vand.u32 %v480, 4294901760
    %v482 = vsub.f32 %v480, %v481
    %v483 = vand.u32 %v482, 4294901760
    %484 = vmatpush1.msra.mxu0 %v483
    %485 = vmatprep.subr.mxu0 0.0
    %486 = vmatpush1.msra.mxu0 0.0
    %487 = vmatprep.subr.mxu0 0.0
    %488 = vmatpush1.msra.mxu0 0.0
    %489 = vmatprep.subr.mxu0 0.0
    %490 = vmatpush1.msra.mxu0 0.0
    %491 = vmatprep.subr.mxu0 0.0
    %492 = vmatpush1.msra.mxu0 0.0
    %493 = vmatprep.subr.mxu0 0.0
    %494 = vmatpush1.msra.mxu0 0.0
    %495 = vmatprep.subr.mxu0 0.0
    %496 = vmatpush1.msra.mxu0 0.0
    %497 = vmatprep.subr.mxu0 0.0
    %498 = vmatpush1.msra.mxu0 0.0
    %499 = vmatprep.subr.mxu0 0.0
    %500 = vmatpush1.msra.mxu0 0.0
    %501 = vmatprep.subr.mxu0 0.0
    %502 = vmatpush1.msra.mxu0 0.0
    %503 = vmatprep.subr.mxu0 0.0
    %504 = vmatpush1.msra.mxu0 0.0
    %505 = vmatprep.subr.mxu0 0.0
    %506 = vmatpush1.msra.mxu0 0.0
    %507 = vmatprep.subr.mxu0 0.0
    %508 = vmatpush1.msra.mxu0 0.0
    %v509 = vand.u32 %v122, 4294901760
    %510 = vmatprep.mubr.f32.mxu0 %v509
    %v511 = vand.u32 %v38, 4294901760
    %512 = vmatmul.mubr.f32.gmra.mrb[0].mxu0 %v511
    %v513 = vpop.f32.mrb[0].mxu0
    %v514 = vadd.f32 %v241, %v513
    %v515 = vpop.f32.mrb[0].mxu0
    %v516 = vadd.f32 %v243, %v515
    %517 = vdwg.mxu0
    %v518 = vand.u32 %v40, 4294901760
    %v519 = vsub.f32 %v40, %v518
    %520 = vmatprep.subr.mxu0 %v519
    %v521 = vand.u32 %v39, 4294901760
    %v522 = vsub.f32 %v39, %v521
    %523 = vmatpush1.msra.mxu0 %v522
    %v524 = vand.u32 %v44, 4294901760
    %v525 = vsub.f32 %v44, %v524
    %526 = vmatprep.subr.mxu0 %v525
    %v527 = vand.u32 %v43, 4294901760
    %v528 = vsub.f32 %v43, %v527
    %529 = vmatpush1.msra.mxu0 %v528
    %v530 = vand.u32 %v48, 4294901760
    %v531 = vsub.f32 %v48, %v530
    %532 = vmatprep.subr.mxu0 %v531
    %v533 = vand.u32 %v47, 4294901760
    %v534 = vsub.f32 %v47, %v533
    %535 = vmatpush1.msra.mxu0 %v534
    %v536 = vand.u32 %v52, 4294901760
    %v537 = vsub.f32 %v52, %v536
    %538 = vmatprep.subr.mxu0 %v537
    %v539 = vand.u32 %v51, 4294901760
    %v540 = vsub.f32 %v51, %v539
    %541 = vmatpush1.msra.mxu0 %v540
    %v542 = vand.u32 %v56, 4294901760
    %v543 = vsub.f32 %v56, %v542
    %544 = vmatprep.subr.mxu0 %v543
    %v545 = vand.u32 %v55, 4294901760
    %v546 = vsub.f32 %v55, %v545
    %547 = vmatpush1.msra.mxu0 %v546
    %v548 = vand.u32 %v60, 4294901760
    %v549 = vsub.f32 %v60, %v548
    %550 = vmatprep.subr.mxu0 %v549
    %v551 = vand.u32 %v59, 4294901760
    %v552 = vsub.f32 %v59, %v551
    %553 = vmatpush1.msra.mxu0 %v552
    %v554 = vand.u32 %v64, 4294901760
    %v555 = vsub.f32 %v64, %v554
    %556 = vmatprep.subr.mxu0 %v555
    %v557 = vand.u32 %v63, 4294901760
    %v558 = vsub.f32 %v63, %v557
    %559 = vmatpush1.msra.mxu0 %v558
    %v560 = vand.u32 %v68, 4294901760
    %v561 = vsub.f32 %v68, %v560
    %562 = vmatprep.subr.mxu0 %v561
    %v563 = vand.u32 %v67, 4294901760
    %v564 = vsub.f32 %v67, %v563
    %565 = vmatpush1.msra.mxu0 %v564
    %v566 = vand.u32 %v72, 4294901760
    %v567 = vsub.f32 %v72, %v566
    %568 = vmatprep.subr.mxu0 %v567
    %v569 = vand.u32 %v71, 4294901760
    %v570 = vsub.f32 %v71, %v569
    %571 = vmatpush1.msra.mxu0 %v570
    %v572 = vand.u32 %v76, 4294901760
    %v573 = vsub.f32 %v76, %v572
    %574 = vmatprep.subr.mxu0 %v573
    %v575 = vand.u32 %v75, 4294901760
    %v576 = vsub.f32 %v75, %v575
    %577 = vmatpush1.msra.mxu0 %v576
    %v578 = vand.u32 %v80, 4294901760
    %v579 = vsub.f32 %v80, %v578
    %580 = vmatprep.subr.mxu0 %v579
    %v581 = vand.u32 %v79, 4294901760
    %v582 = vsub.f32 %v79, %v581
    %583 = vmatpush1.msra.mxu0 %v582
    %v584 = vand.u32 %v84, 4294901760
    %v585 = vsub.f32 %v84, %v584
    %586 = vmatprep.subr.mxu0 %v585
    %v587 = vand.u32 %v83, 4294901760
    %v588 = vsub.f32 %v83, %v587
    %589 = vmatpush1.msra.mxu0 %v588
    %v590 = vand.u32 %v88, 4294901760
    %v591 = vsub.f32 %v88, %v590
    %592 = vmatprep.subr.mxu0 %v591
    %v593 = vand.u32 %v87, 4294901760
    %v594 = vsub.f32 %v87, %v593
    %595 = vmatpush1.msra.mxu0 %v594
    %v596 = vand.u32 %v92, 4294901760
    %v597 = vsub.f32 %v92, %v596
    %598 = vmatprep.subr.mxu0 %v597
    %v599 = vand.u32 %v91, 4294901760
    %v600 = vsub.f32 %v91, %v599
    %601 = vmatpush1.msra.mxu0 %v600
    %v602 = vand.u32 %v96, 4294901760
    %v603 = vsub.f32 %v96, %v602
    %604 = vmatprep.subr.mxu0 %v603
    %v605 = vand.u32 %v95, 4294901760
    %v606 = vsub.f32 %v95, %v605
    %607 = vmatpush1.msra.mxu0 %v606
    %v608 = vand.u32 %v100, 4294901760
    %v609 = vsub.f32 %v100, %v608
    %610 = vmatprep.subr.mxu0 %v609
    %v611 = vand.u32 %v99, 4294901760
    %v612 = vsub.f32 %v99, %v611
    %613 = vmatpush1.msra.mxu0 %v612
    %v614 = vand.u32 %v104, 4294901760
    %v615 = vsub.f32 %v104, %v614
    %616 = vmatprep.subr.mxu0 %v615
    %v617 = vand.u32 %v103, 4294901760
    %v618 = vsub.f32 %v103, %v617
    %619 = vmatpush1.msra.mxu0 %v618
    %v620 = vand.u32 %v108, 4294901760
    %v621 = vsub.f32 %v108, %v620
    %622 = vmatprep.subr.mxu0 %v621
    %v623 = vand.u32 %v107, 4294901760
    %v624 = vsub.f32 %v107, %v623
    %625 = vmatpush1.msra.mxu0 %v624
    %v626 = vand.u32 %v112, 4294901760
    %v627 = vsub.f32 %v112, %v626
    %628 = vmatprep.subr.mxu0 %v627
    %v629 = vand.u32 %v111, 4294901760
    %v630 = vsub.f32 %v111, %v629
    %631 = vmatpush1.msra.mxu0 %v630
    %v632 = vand.u32 %v116, 4294901760
    %v633 = vsub.f32 %v116, %v632
    %634 = vmatprep.subr.mxu0 %v633
    %v635 = vand.u32 %v115, 4294901760
    %v636 = vsub.f32 %v115, %v635
    %637 = vmatpush1.msra.mxu0 %v636
    %638 = vmatprep.subr.mxu0 0.0
    %639 = vmatpush1.msra.mxu0 0.0
    %640 = vmatprep.subr.mxu0 0.0
    %641 = vmatpush1.msra.mxu0 0.0
    %642 = vmatprep.subr.mxu0 0.0
    %643 = vmatpush1.msra.mxu0 0.0
    %644 = vmatprep.subr.mxu0 0.0
    %645 = vmatpush1.msra.mxu0 0.0
    %646 = vmatprep.subr.mxu0 0.0
    %647 = vmatpush1.msra.mxu0 0.0
    %648 = vmatprep.subr.mxu0 0.0
    %649 = vmatpush1.msra.mxu0 0.0
    %650 = vmatprep.subr.mxu0 0.0
    %651 = vmatpush1.msra.mxu0 0.0
    %652 = vmatprep.subr.mxu0 0.0
    %653 = vmatpush1.msra.mxu0 0.0
    %654 = vmatprep.subr.mxu0 0.0
    %655 = vmatpush1.msra.mxu0 0.0
    %656 = vmatprep.subr.mxu0 0.0
    %657 = vmatpush1.msra.mxu0 0.0
    %658 = vmatprep.subr.mxu0 0.0
    %659 = vmatpush1.msra.mxu0 0.0
    %660 = vmatprep.subr.mxu0 0.0
    %661 = vmatpush1.msra.mxu0 0.0
    %v662 = vand.u32 %v122, 4294901760
    %v663 = vsub.f32 %v122, %v662
    %664 = vmatprep.mubr.f32.mxu0 %v663
    %v665 = vand.u32 %v38, 4294901760
    %v666 = vsub.f32 %v38, %v665
    %667 = vmatmul.mubr.f32.gmra.mrb[0].mxu0 %v666
    %v668 = vpop.f32.mrb[0].mxu0
    %v669 = vadd.f32 %v514, %v668
    %v670 = vpop.f32.mrb[0].mxu0
    %v671 = vadd.f32 %v516, %v670
    %672 = vdwg.mxu0
    %v673 = vand.u32 %v40, 4294901760
    %674 = vmatprep.subr.mxu0 %v673
    %v675 = vand.u32 %v39, 4294901760
    %676 = vmatpush1.msra.mxu0 %v675
    %v677 = vand.u32 %v44, 4294901760
    %678 = vmatprep.subr.mxu0 %v677
    %v679 = vand.u32 %v43, 4294901760
    %680 = vmatpush1.msra.mxu0 %v679
    %v681 = vand.u32 %v48, 4294901760
    %682 = vmatprep.subr.mxu0 %v681
    %v683 = vand.u32 %v47, 4294901760
    %684 = vmatpush1.msra.mxu0 %v683
    %v685 = vand.u32 %v52, 4294901760
    %686 = vmatprep.subr.mxu0 %v685
    %v687 = vand.u32 %v51, 4294901760
    %688 = vmatpush1.msra.mxu0 %v687
    %v689 = vand.u32 %v56, 4294901760
    %690 = vmatprep.subr.mxu0 %v689
    %v691 = vand.u32 %v55, 4294901760
    %692 = vmatpush1.msra.mxu0 %v691
    %v693 = vand.u32 %v60, 4294901760
    %694 = vmatprep.subr.mxu0 %v693
    %v695 = vand.u32 %v59, 4294901760
    %696 = vmatpush1.msra.mxu0 %v695
    %v697 = vand.u32 %v64, 4294901760
    %698 = vmatprep.subr.mxu0 %v697
    %v699 = vand.u32 %v63, 4294901760
    %700 = vmatpush1.msra.mxu0 %v699
    %v701 = vand.u32 %v68, 4294901760
    %702 = vmatprep.subr.mxu0 %v701
    %v703 = vand.u32 %v67, 4294901760
    %704 = vmatpush1.msra.mxu0 %v703
    %v705 = vand.u32 %v72, 4294901760
    %706 = vmatprep.subr.mxu0 %v705
    %v707 = vand.u32 %v71, 4294901760
    %708 = vmatpush1.msra.mxu0 %v707
    %v709 = vand.u32 %v76, 4294901760
    %710 = vmatprep.subr.mxu0 %v709
    %v711 = vand.u32 %v75, 4294901760
    %712 = vmatpush1.msra.mxu0 %v711
    %v713 = vand.u32 %v80, 4294901760
    %714 = vmatprep.subr.mxu0 %v713
    %v715 = vand.u32 %v79, 4294901760
    %716 = vmatpush1.msra.mxu0 %v715
    %v717 = vand.u32 %v84, 4294901760
    %718 = vmatprep.subr.mxu0 %v717
    %v719 = vand.u32 %v83, 4294901760
    %720 = vmatpush1.msra.mxu0 %v719
    %v721 = vand.u32 %v88, 4294901760
    %722 = vmatprep.subr.mxu0 %v721
    %v723 = vand.u32 %v87, 4294901760
    %724 = vmatpush1.msra.mxu0 %v723
    %v725 = vand.u32 %v92, 4294901760
    %726 = vmatprep.subr.mxu0 %v725
    %v727 = vand.u32 %v91, 4294901760
    %728 = vmatpush1.msra.mxu0 %v727
    %v729 = vand.u32 %v96, 4294901760
    %730 = vmatprep.subr.mxu0 %v729
    %v731 = vand.u32 %v95, 4294901760
    %732 = vmatpush1.msra.mxu0 %v731
    %v733 = vand.u32 %v100, 4294901760
    %734 = vmatprep.subr.mxu0 %v733
    %v735 = vand.u32 %v99, 4294901760
    %736 = vmatpush1.msra.mxu0 %v735
    %v737 = vand.u32 %v104, 4294901760
    %738 = vmatprep.subr.mxu0 %v737
    %v739 = vand.u32 %v103, 4294901760
    %740 = vmatpush1.msra.mxu0 %v739
    %v741 = vand.u32 %v108, 4294901760
    %742 = vmatprep.subr.mxu0 %v741
    %v743 = vand.u32 %v107, 4294901760
    %744 = vmatpush1.msra.mxu0 %v743
    %v745 = vand.u32 %v112, 4294901760
    %746 = vmatprep.subr.mxu0 %v745
    %v747 = vand.u32 %v111, 4294901760
    %748 = vmatpush1.msra.mxu0 %v747
    %v749 = vand.u32 %v116, 4294901760
    %750 = vmatprep.subr.mxu0 %v749
    %v751 = vand.u32 %v115, 4294901760
    %752 = vmatpush1.msra.mxu0 %v751
    %753 = vmatprep.subr.mxu0 0.0
    %754 = vmatpush1.msra.mxu0 0.0
    %755 = vmatprep.subr.mxu0 0.0
    %756 = vmatpush1.msra.mxu0 0.0
    %757 = vmatprep.subr.mxu0 0.0
    %758 = vmatpush1.msra.mxu0 0.0
    %759 = vmatprep.subr.mxu0 0.0
    %760 = vmatpush1.msra.mxu0 0.0
    %761 = vmatprep.subr.mxu0 0.0
    %762 = vmatpush1.msra.mxu0 0.0
    %763 = vmatprep.subr.mxu0 0.0
    %764 = vmatpush1.msra.mxu0 0.0
    %765 = vmatprep.subr.mxu0 0.0
    %766 = vmatpush1.msra.mxu0 0.0
    %767 = vmatprep.subr.mxu0 0.0
    %768 = vmatpush1.msra.mxu0 0.0
    %769 = vmatprep.subr.mxu0 0.0
    %770 = vmatpush1.msra.mxu0 0.0
    %771 = vmatprep.subr.mxu0 0.0
    %772 = vmatpush1.msra.mxu0 0.0
    %773 = vmatprep.subr.mxu0 0.0
    %774 = vmatpush1.msra.mxu0 0.0
    %775 = vmatprep.subr.mxu0 0.0
    %776 = vmatpush1.msra.mxu0 0.0
    %v777 = vand.u32 %v122, 4294901760
    %v778 = vsub.f32 %v122, %v777
    %v779 = vand.u32 %v778, 4294901760
    %780 = vmatprep.mubr.f32.mxu0 %v779
    %v781 = vand.u32 %v38, 4294901760
    %v782 = vsub.f32 %v38, %v781
    %v783 = vand.u32 %v782, 4294901760
    %784 = vmatmul.mubr.f32.gmra.mrb[0].mxu0 %v783
    %v785 = vpop.f32.mrb[0].mxu0
    %v786 = vadd.f32 %v669, %v785
    %v787 = vpop.f32.mrb[0].mxu0
    %v788 = vadd.f32 %v671, %v787
    %789 = vdwg.mxu0
    %v790 = vand.u32 %v40, 4294901760
    %v791 = vsub.f32 %v40, %v790
    %v792 = vand.u32 %v791, 4294901760
    %793 = vmatprep.subr.mxu0 %v792
    %v794 = vand.u32 %v39, 4294901760
    %v795 = vsub.f32 %v39, %v794
    %v796 = vand.u32 %v795, 4294901760
    %797 = vmatpush1.msra.mxu0 %v796
    %v798 = vand.u32 %v44, 4294901760
    %v799 = vsub.f32 %v44, %v798
    %v800 = vand.u32 %v799, 4294901760
    %801 = vmatprep.subr.mxu0 %v800
    %v802 = vand.u32 %v43, 4294901760
    %v803 = vsub.f32 %v43, %v802
    %v804 = vand.u32 %v803, 4294901760
    %805 = vmatpush1.msra.mxu0 %v804
    %v806 = vand.u32 %v48, 4294901760
    %v807 = vsub.f32 %v48, %v806
    %v808 = vand.u32 %v807, 4294901760
    %809 = vmatprep.subr.mxu0 %v808
    %v810 = vand.u32 %v47, 4294901760
    %v811 = vsub.f32 %v47, %v810
    %v812 = vand.u32 %v811, 4294901760
    %813 = vmatpush1.msra.mxu0 %v812
    %v814 = vand.u32 %v52, 4294901760
    %v815 = vsub.f32 %v52, %v814
    %v816 = vand.u32 %v815, 4294901760
    %817 = vmatprep.subr.mxu0 %v816
    %v818 = vand.u32 %v51, 4294901760
    %v819 = vsub.f32 %v51, %v818
    %v820 = vand.u32 %v819, 4294901760
    %821 = vmatpush1.msra.mxu0 %v820
    %v822 = vand.u32 %v56, 4294901760
    %v823 = vsub.f32 %v56, %v822
    %v824 = vand.u32 %v823, 4294901760
    %825 = vmatprep.subr.mxu0 %v824
    %v826 = vand.u32 %v55, 4294901760
    %v827 = vsub.f32 %v55, %v826
    %v828 = vand.u32 %v827, 4294901760
    %829 = vmatpush1.msra.mxu0 %v828
    %v830 = vand.u32 %v60, 4294901760
    %v831 = vsub.f32 %v60, %v830
    %v832 = vand.u32 %v831, 4294901760
    %833 = vmatprep.subr.mxu0 %v832
    %v834 = vand.u32 %v59, 4294901760
    %v835 = vsub.f32 %v59, %v834
    %v836 = vand.u32 %v835, 4294901760
    %837 = vmatpush1.msra.mxu0 %v836
    %v838 = vand.u32 %v64, 4294901760
    %v839 = vsub.f32 %v64, %v838
    %v840 = vand.u32 %v839, 4294901760
    %841 = vmatprep.subr.mxu0 %v840
    %v842 = vand.u32 %v63, 4294901760
    %v843 = vsub.f32 %v63, %v842
    %v844 = vand.u32 %v843, 4294901760
    %845 = vmatpush1.msra.mxu0 %v844
    %v846 = vand.u32 %v68, 4294901760
    %v847 = vsub.f32 %v68, %v846
    %v848 = vand.u32 %v847, 4294901760
    %849 = vmatprep.subr.mxu0 %v848
    %v850 = vand.u32 %v67, 4294901760
    %v851 = vsub.f32 %v67, %v850
    %v852 = vand.u32 %v851, 4294901760
    %853 = vmatpush1.msra.mxu0 %v852
    %v854 = vand.u32 %v72, 4294901760
    %v855 = vsub.f32 %v72, %v854
    %v856 = vand.u32 %v855, 4294901760
    %857 = vmatprep.subr.mxu0 %v856
    %v858 = vand.u32 %v71, 4294901760
    %v859 = vsub.f32 %v71, %v858
    %v860 = vand.u32 %v859, 4294901760
    %861 = vmatpush1.msra.mxu0 %v860
    %v862 = vand.u32 %v76, 4294901760
    %v863 = vsub.f32 %v76, %v862
    %v864 = vand.u32 %v863, 4294901760
    %865 = vmatprep.subr.mxu0 %v864
    %v866 = vand.u32 %v75, 4294901760
    %v867 = vsub.f32 %v75, %v866
    %v868 = vand.u32 %v867, 4294901760
    %869 = vmatpush1.msra.mxu0 %v868
    %v870 = vand.u32 %v80, 4294901760
    %v871 = vsub.f32 %v80, %v870
    %v872 = vand.u32 %v871, 4294901760
    %873 = vmatprep.subr.mxu0 %v872
    %v874 = vand.u32 %v79, 4294901760
    %v875 = vsub.f32 %v79, %v874
    %v876 = vand.u32 %v875, 4294901760
    %877 = vmatpush1.msra.mxu0 %v876
    %v878 = vand.u32 %v84, 4294901760
    %v879 = vsub.f32 %v84, %v878
    %v880 = vand.u32 %v879, 4294901760
    %881 = vmatprep.subr.mxu0 %v880
    %v882 = vand.u32 %v83, 4294901760
    %v883 = vsub.f32 %v83, %v882
    %v884 = vand.u32 %v883, 4294901760
    %885 = vmatpush1.msra.mxu0 %v884
    %v886 = vand.u32 %v88, 4294901760
    %v887 = vsub.f32 %v88, %v886
    %v888 = vand.u32 %v887, 4294901760
    %889 = vmatprep.subr.mxu0 %v888
    %v890 = vand.u32 %v87, 4294901760
    %v891 = vsub.f32 %v87, %v890
    %v892 = vand.u32 %v891, 4294901760
    %893 = vmatpush1.msra.mxu0 %v892
    %v894 = vand.u32 %v92, 4294901760
    %v895 = vsub.f32 %v92, %v894
    %v896 = vand.u32 %v895, 4294901760
    %897 = vmatprep.subr.mxu0 %v896
    %v898 = vand.u32 %v91, 4294901760
    %v899 = vsub.f32 %v91, %v898
    %v900 = vand.u32 %v899, 4294901760
    %901 = vmatpush1.msra.mxu0 %v900
    %v902 = vand.u32 %v96, 4294901760
    %v903 = vsub.f32 %v96, %v902
    %v904 = vand.u32 %v903, 4294901760
    %905 = vmatprep.subr.mxu0 %v904
    %v906 = vand.u32 %v95, 4294901760
    %v907 = vsub.f32 %v95, %v906
    %v908 = vand.u32 %v907, 4294901760
    %909 = vmatpush1.msra.mxu0 %v908
    %v910 = vand.u32 %v100, 4294901760
    %v911 = vsub.f32 %v100, %v910
    %v912 = vand.u32 %v911, 4294901760
    %913 = vmatprep.subr.mxu0 %v912
    %v914 = vand.u32 %v99, 4294901760
    %v915 = vsub.f32 %v99, %v914
    %v916 = vand.u32 %v915, 4294901760
    %917 = vmatpush1.msra.mxu0 %v916
    %v918 = vand.u32 %v104, 4294901760
    %v919 = vsub.f32 %v104, %v918
    %v920 = vand.u32 %v919, 4294901760
    %921 = vmatprep.subr.mxu0 %v920
    %v922 = vand.u32 %v103, 4294901760
    %v923 = vsub.f32 %v103, %v922
    %v924 = vand.u32 %v923, 4294901760
    %925 = vmatpush1.msra.mxu0 %v924
    %v926 = vand.u32 %v108, 4294901760
    %v927 = vsub.f32 %v108, %v926
    %v928 = vand.u32 %v927, 4294901760
    %929 = vmatprep.subr.mxu0 %v928
    %v930 = vand.u32 %v107, 4294901760
    %v931 = vsub.f32 %v107, %v930
    %v932 = vand.u32 %v931, 4294901760
    %933 = vmatpush1.msra.mxu0 %v932
    %v934 = vand.u32 %v112, 4294901760
    %v935 = vsub.f32 %v112, %v934
    %v936 = vand.u32 %v935, 4294901760
    %937 = vmatprep.subr.mxu0 %v936
    %v938 = vand.u32 %v111, 4294901760
    %v939 = vsub.f32 %v111, %v938
    %v940 = vand.u32 %v939, 4294901760
    %941 = vmatpush1.msra.mxu0 %v940
    %v942 = vand.u32 %v116, 4294901760
    %v943 = vsub.f32 %v116, %v942
    %v944 = vand.u32 %v943, 4294901760
    %945 = vmatprep.subr.mxu0 %v944
    %v946 = vand.u32 %v115, 4294901760
    %v947 = vsub.f32 %v115, %v946
    %v948 = vand.u32 %v947, 4294901760
    %949 = vmatpush1.msra.mxu0 %v948
    %950 = vmatprep.subr.mxu0 0.0
    %951 = vmatpush1.msra.mxu0 0.0
    %952 = vmatprep.subr.mxu0 0.0
    %953 = vmatpush1.msra.mxu0 0.0
    %954 = vmatprep.subr.mxu0 0.0
    %955 = vmatpush1.msra.mxu0 0.0
    %956 = vmatprep.subr.mxu0 0.0
    %957 = vmatpush1.msra.mxu0 0.0
    %958 = vmatprep.subr.mxu0 0.0
    %959 = vmatpush1.msra.mxu0 0.0
    %960 = vmatprep.subr.mxu0 0.0
    %961 = vmatpush1.msra.mxu0 0.0
    %962 = vmatprep.subr.mxu0 0.0
    %963 = vmatpush1.msra.mxu0 0.0
    %964 = vmatprep.subr.mxu0 0.0
    %965 = vmatpush1.msra.mxu0 0.0
    %966 = vmatprep.subr.mxu0 0.0
    %967 = vmatpush1.msra.mxu0 0.0
    %968 = vmatprep.subr.mxu0 0.0
    %969 = vmatpush1.msra.mxu0 0.0
    %970 = vmatprep.subr.mxu0 0.0
    %971 = vmatpush1.msra.mxu0 0.0
    %972 = vmatprep.subr.mxu0 0.0
    %973 = vmatpush1.msra.mxu0 0.0
    %v974 = vand.u32 %v122, 4294901760
    %975 = vmatprep.mubr.f32.mxu0 %v974
    %v976 = vand.u32 %v38, 4294901760
    %977 = vmatmul.mubr.f32.gmra.mrb[0].mxu0 %v976
    %v978 = vpop.f32.mrb[0].mxu0
    %v979 = vadd.f32 %v786, %v978
    %v980 = vpop.f32.mrb[0].mxu0
    %v981 = vadd.f32 %v788, %v980
    %982 = vdwg.mxu0
    %v983 = vand.u32 %v40, 4294901760
    %984 = vmatprep.subr.mxu0 %v983
    %v985 = vand.u32 %v39, 4294901760
    %986 = vmatpush1.msra.mxu0 %v985
    %v987 = vand.u32 %v44, 4294901760
    %988 = vmatprep.subr.mxu0 %v987
    %v989 = vand.u32 %v43, 4294901760
    %990 = vmatpush1.msra.mxu0 %v989
    %v991 = vand.u32 %v48, 4294901760
    %992 = vmatprep.subr.mxu0 %v991
    %v993 = vand.u32 %v47, 4294901760
    %994 = vmatpush1.msra.mxu0 %v993
    %v995 = vand.u32 %v52, 4294901760
    %996 = vmatprep.subr.mxu0 %v995
    %v997 = vand.u32 %v51, 4294901760
    %998 = vmatpush1.msra.mxu0 %v997
    %v999 = vand.u32 %v56, 4294901760
    %1000 = vmatprep.subr.mxu0 %v999
    %v1001 = vand.u32 %v55, 4294901760
    %1002 = vmatpush1.msra.mxu0 %v1001
    %v1003 = vand.u32 %v60, 4294901760
    %1004 = vmatprep.subr.mxu0 %v1003
    %v1005 = vand.u32 %v59, 4294901760
    %1006 = vmatpush1.msra.mxu0 %v1005
    %v1007 = vand.u32 %v64, 4294901760
    %1008 = vmatprep.subr.mxu0 %v1007
    %v1009 = vand.u32 %v63, 4294901760
    %1010 = vmatpush1.msra.mxu0 %v1009
    %v1011 = vand.u32 %v68, 4294901760
    %1012 = vmatprep.subr.mxu0 %v1011
    %v1013 = vand.u32 %v67, 4294901760
    %1014 = vmatpush1.msra.mxu0 %v1013
    %v1015 = vand.u32 %v72, 4294901760
    %1016 = vmatprep.subr.mxu0 %v1015
    %v1017 = vand.u32 %v71, 4294901760
    %1018 = vmatpush1.msra.mxu0 %v1017
    %v1019 = vand.u32 %v76, 4294901760
    %1020 = vmatprep.subr.mxu0 %v1019
    %v1021 = vand.u32 %v75, 4294901760
    %1022 = vmatpush1.msra.mxu0 %v1021
    %v1023 = vand.u32 %v80, 4294901760
    %1024 = vmatprep.subr.mxu0 %v1023
    %v1025 = vand.u32 %v79, 4294901760
    %1026 = vmatpush1.msra.mxu0 %v1025
    %v1027 = vand.u32 %v84, 4294901760
    %1028 = vmatprep.subr.mxu0 %v1027
    %v1029 = vand.u32 %v83, 4294901760
    %1030 = vmatpush1.msra.mxu0 %v1029
    %v1031 = vand.u32 %v88, 4294901760
    %1032 = vmatprep.subr.mxu0 %v1031
    %v1033 = vand.u32 %v87, 4294901760
    %1034 = vmatpush1.msra.mxu0 %v1033
    %v1035 = vand.u32 %v92, 4294901760
    %1036 = vmatprep.subr.mxu0 %v1035
    %v1037 = vand.u32 %v91, 4294901760
    %1038 = vmatpush1.msra.mxu0 %v1037
    %v1039 = vand.u32 %v96, 4294901760
    %1040 = vmatprep.subr.mxu0 %v1039
    %v1041 = vand.u32 %v95, 4294901760
    %1042 = vmatpush1.msra.mxu0 %v1041
    %v1043 = vand.u32 %v100, 4294901760
    %1044 = vmatprep.subr.mxu0 %v1043
    %v1045 = vand.u32 %v99, 4294901760
    %1046 = vmatpush1.msra.mxu0 %v1045
    %v1047 = vand.u32 %v104, 4294901760
    %1048 = vmatprep.subr.mxu0 %v1047
    %v1049 = vand.u32 %v103, 4294901760
    %1050 = vmatpush1.msra.mxu0 %v1049
    %v1051 = vand.u32 %v108, 4294901760
    %1052 = vmatprep.subr.mxu0 %v1051
    %v1053 = vand.u32 %v107, 4294901760
    %1054 = vmatpush1.msra.mxu0 %v1053
    %v1055 = vand.u32 %v112, 4294901760
    %1056 = vmatprep.subr.mxu0 %v1055
    %v1057 = vand.u32 %v111, 4294901760
    %1058 = vmatpush1.msra.mxu0 %v1057
    %v1059 = vand.u32 %v116, 4294901760
    %1060 = vmatprep.subr.mxu0 %v1059
    %v1061 = vand.u32 %v115, 4294901760
    %1062 = vmatpush1.msra.mxu0 %v1061
    %1063 = vmatprep.subr.mxu0 0.0
    %1064 = vmatpush1.msra.mxu0 0.0
    %1065 = vmatprep.subr.mxu0 0.0
    %1066 = vmatpush1.msra.mxu0 0.0
    %1067 = vmatprep.subr.mxu0 0.0
    %1068 = vmatpush1.msra.mxu0 0.0
    %1069 = vmatprep.subr.mxu0 0.0
    %1070 = vmatpush1.msra.mxu0 0.0
    %1071 = vmatprep.subr.mxu0 0.0
    %1072 = vmatpush1.msra.mxu0 0.0
    %1073 = vmatprep.subr.mxu0 0.0
    %1074 = vmatpush1.msra.mxu0 0.0
    %1075 = vmatprep.subr.mxu0 0.0
    %1076 = vmatpush1.msra.mxu0 0.0
    %1077 = vmatprep.subr.mxu0 0.0
    %1078 = vmatpush1.msra.mxu0 0.0
    %1079 = vmatprep.subr.mxu0 0.0
    %1080 = vmatpush1.msra.mxu0 0.0
    %1081 = vmatprep.subr.mxu0 0.0
    %1082 = vmatpush1.msra.mxu0 0.0
    %1083 = vmatprep.subr.mxu0 0.0
    %1084 = vmatpush1.msra.mxu0 0.0
    %1085 = vmatprep.subr.mxu0 0.0
    %1086 = vmatpush1.msra.mxu0 0.0
    %v1087 = vand.u32 %v122, 4294901760
    %1088 = vmatprep.mubr.f32.mxu0 %v1087
    %v1089 = vand.u32 %v38, 4294901760
    %1090 = vmatmul.mubr.f32.gmra.mrb[0].mxu0 %v1089
    %v1091 = vpop.f32.mrb[0].mxu0
    %v1092 = vadd.f32 %v979, %v1091
    %v1093 = vpop.f32.mrb[0].mxu0
    %v1094 = vadd.f32 %v981, %v1093
    %1095 = vdwg.mxu0
    %v1096 = vand.u32 %v42, 4294901760
    %1097 = vmatprep.subr.mxu0 %v1096
    %v1098 = vand.u32 %v41, 4294901760
    %1099 = vmatpush1.msra.mxu0 %v1098
    %v1100 = vand.u32 %v46, 4294901760
    %1101 = vmatprep.subr.mxu0 %v1100
    %v1102 = vand.u32 %v45, 4294901760
    %1103 = vmatpush1.msra.mxu0 %v1102
    %v1104 = vand.u32 %v50, 4294901760
    %1105 = vmatprep.subr.mxu0 %v1104
    %v1106 = vand.u32 %v49, 4294901760
    %1107 = vmatpush1.msra.mxu0 %v1106
    %v1108 = vand.u32 %v54, 4294901760
    %1109 = vmatprep.subr.mxu0 %v1108
    %v1110 = vand.u32 %v53, 4294901760
    %1111 = vmatpush1.msra.mxu0 %v1110
    %v1112 = vand.u32 %v58, 4294901760
    %1113 = vmatprep.subr.mxu0 %v1112
    %v1114 = vand.u32 %v57, 4294901760
    %1115 = vmatpush1.msra.mxu0 %v1114
    %v1116 = vand.u32 %v62, 4294901760
    %1117 = vmatprep.subr.mxu0 %v1116
    %v1118 = vand.u32 %v61, 4294901760
    %1119 = vmatpush1.msra.mxu0 %v1118
    %v1120 = vand.u32 %v66, 4294901760
    %1121 = vmatprep.subr.mxu0 %v1120
    %v1122 = vand.u32 %v65, 4294901760
    %1123 = vmatpush1.msra.mxu0 %v1122
    %v1124 = vand.u32 %v70, 4294901760
    %1125 = vmatprep.subr.mxu0 %v1124
    %v1126 = vand.u32 %v69, 4294901760
    %1127 = vmatpush1.msra.mxu0 %v1126
    %v1128 = vand.u32 %v74, 4294901760
    %1129 = vmatprep.subr.mxu0 %v1128
    %v1130 = vand.u32 %v73, 4294901760
    %1131 = vmatpush1.msra.mxu0 %v1130
    %v1132 = vand.u32 %v78, 4294901760
    %1133 = vmatprep.subr.mxu0 %v1132
    %v1134 = vand.u32 %v77, 4294901760
    %1135 = vmatpush1.msra.mxu0 %v1134
    %v1136 = vand.u32 %v82, 4294901760
    %1137 = vmatprep.subr.mxu0 %v1136
    %v1138 = vand.u32 %v81, 4294901760
    %1139 = vmatpush1.msra.mxu0 %v1138
    %v1140 = vand.u32 %v86, 4294901760
    %1141 = vmatprep.subr.mxu0 %v1140
    %v1142 = vand.u32 %v85, 4294901760
    %1143 = vmatpush1.msra.mxu0 %v1142
    %v1144 = vand.u32 %v90, 4294901760
    %1145 = vmatprep.subr.mxu0 %v1144
    %v1146 = vand.u32 %v89, 4294901760
    %1147 = vmatpush1.msra.mxu0 %v1146
    %v1148 = vand.u32 %v94, 4294901760
    %1149 = vmatprep.subr.mxu0 %v1148
    %v1150 = vand.u32 %v93, 4294901760
    %1151 = vmatpush1.msra.mxu0 %v1150
    %v1152 = vand.u32 %v98, 4294901760
    %1153 = vmatprep.subr.mxu0 %v1152
    %v1154 = vand.u32 %v97, 4294901760
    %1155 = vmatpush1.msra.mxu0 %v1154
    %v1156 = vand.u32 %v102, 4294901760
    %1157 = vmatprep.subr.mxu0 %v1156
    %v1158 = vand.u32 %v101, 4294901760
    %1159 = vmatpush1.msra.mxu0 %v1158
    %v1160 = vand.u32 %v106, 4294901760
    %1161 = vmatprep.subr.mxu0 %v1160
    %v1162 = vand.u32 %v105, 4294901760
    %1163 = vmatpush1.msra.mxu0 %v1162
    %v1164 = vand.u32 %v110, 4294901760
    %1165 = vmatprep.subr.mxu0 %v1164
    %v1166 = vand.u32 %v109, 4294901760
    %1167 = vmatpush1.msra.mxu0 %v1166
    %v1168 = vand.u32 %v114, 4294901760
    %1169 = vmatprep.subr.mxu0 %v1168
    %v1170 = vand.u32 %v113, 4294901760
    %1171 = vmatpush1.msra.mxu0 %v1170
    %v1172 = vand.u32 %v118, 4294901760
    %1173 = vmatprep.subr.mxu0 %v1172
    %v1174 = vand.u32 %v117, 4294901760
    %1175 = vmatpush1.msra.mxu0 %v1174
    %1176 = vmatprep.subr.mxu0 0.0
    %1177 = vmatpush1.msra.mxu0 0.0
    %1178 = vmatprep.subr.mxu0 0.0
    %1179 = vmatpush1.msra.mxu0 0.0
    %1180 = vmatprep.subr.mxu0 0.0
    %1181 = vmatpush1.msra.mxu0 0.0
    %1182 = vmatprep.subr.mxu0 0.0
    %1183 = vmatpush1.msra.mxu0 0.0
    %1184 = vmatprep.subr.mxu0 0.0
    %1185 = vmatpush1.msra.mxu0 0.0
    %1186 = vmatprep.subr.mxu0 0.0
    %1187 = vmatpush1.msra.mxu0 0.0
    %1188 = vmatprep.subr.mxu0 0.0
    %1189 = vmatpush1.msra.mxu0 0.0
    %1190 = vmatprep.subr.mxu0 0.0
    %1191 = vmatpush1.msra.mxu0 0.0
    %1192 = vmatprep.subr.mxu0 0.0
    %1193 = vmatpush1.msra.mxu0 0.0
    %1194 = vmatprep.subr.mxu0 0.0
    %1195 = vmatpush1.msra.mxu0 0.0
    %1196 = vmatprep.subr.mxu0 0.0
    %1197 = vmatpush1.msra.mxu0 0.0
    %1198 = vmatprep.subr.mxu0 0.0
    %1199 = vmatpush1.msra.mxu0 0.0
    %v1200 = vand.u32 %v122, 4294901760
    %v1201 = vsub.f32 %v122, %v1200
    %v1202 = vand.u32 %v1201, 4294901760
    %v1203 = vsub.f32 %v1201, %v1202
    %v1204 = vand.u32 %v1203, 4294901760
    %1205 = vmatprep.mubr.f32.mxu0 %v1204
    %v1206 = vand.u32 %v38, 4294901760
    %v1207 = vsub.f32 %v38, %v1206
    %v1208 = vand.u32 %v1207, 4294901760
    %v1209 = vsub.f32 %v1207, %v1208
    %v1210 = vand.u32 %v1209, 4294901760
    %1211 = vmatmul.mubr.f32.gmra.mrb[0].mxu0 %v1210
    %v1212 = vpop.f32.mrb[0].mxu0
    %v1213 = vadd.f32 0.0, %v1212
    %v1214 = vpop.f32.mrb[0].mxu0
    %v1215 = vadd.f32 0.0, %v1214
    %1216 = vdwg.mxu0
    %v1217 = vand.u32 %v42, 4294901760
    %v1218 = vsub.f32 %v42, %v1217
    %v1219 = vand.u32 %v1218, 4294901760
    %v1220 = vsub.f32 %v1218, %v1219
    %v1221 = vand.u32 %v1220, 4294901760
    %1222 = vmatprep.subr.mxu0 %v1221
    %v1223 = vand.u32 %v41, 4294901760
    %v1224 = vsub.f32 %v41, %v1223
    %v1225 = vand.u32 %v1224, 4294901760
    %v1226 = vsub.f32 %v1224, %v1225
    %v1227 = vand.u32 %v1226, 4294901760
    %1228 = vmatpush1.msra.mxu0 %v1227
    %v1229 = vand.u32 %v46, 4294901760
    %v1230 = vsub.f32 %v46, %v1229
    %v1231 = vand.u32 %v1230, 4294901760
    %v1232 = vsub.f32 %v1230, %v1231
    %v1233 = vand.u32 %v1232, 4294901760
    %1234 = vmatprep.subr.mxu0 %v1233
    %v1235 = vand.u32 %v45, 4294901760
    %v1236 = vsub.f32 %v45, %v1235
    %v1237 = vand.u32 %v1236, 4294901760
    %v1238 = vsub.f32 %v1236, %v1237
    %v1239 = vand.u32 %v1238, 4294901760
    %1240 = vmatpush1.msra.mxu0 %v1239
    %v1241 = vand.u32 %v50, 4294901760
    %v1242 = vsub.f32 %v50, %v1241
    %v1243 = vand.u32 %v1242, 4294901760
    %v1244 = vsub.f32 %v1242, %v1243
    %v1245 = vand.u32 %v1244, 4294901760
    %1246 = vmatprep.subr.mxu0 %v1245
    %v1247 = vand.u32 %v49, 4294901760
    %v1248 = vsub.f32 %v49, %v1247
    %v1249 = vand.u32 %v1248, 4294901760
    %v1250 = vsub.f32 %v1248, %v1249
    %v1251 = vand.u32 %v1250, 4294901760
    %1252 = vmatpush1.msra.mxu0 %v1251
    %v1253 = vand.u32 %v54, 4294901760
    %v1254 = vsub.f32 %v54, %v1253
    %v1255 = vand.u32 %v1254, 4294901760
    %v1256 = vsub.f32 %v1254, %v1255
    %v1257 = vand.u32 %v1256, 4294901760
    %1258 = vmatprep.subr.mxu0 %v1257
    %v1259 = vand.u32 %v53, 4294901760
    %v1260 = vsub.f32 %v53, %v1259
    %v1261 = vand.u32 %v1260, 4294901760
    %v1262 = vsub.f32 %v1260, %v1261
    %v1263 = vand.u32 %v1262, 4294901760
    %1264 = vmatpush1.msra.mxu0 %v1263
    %v1265 = vand.u32 %v58, 4294901760
    %v1266 = vsub.f32 %v58, %v1265
    %v1267 = vand.u32 %v1266, 4294901760
    %v1268 = vsub.f32 %v1266, %v1267
    %v1269 = vand.u32 %v1268, 4294901760
    %1270 = vmatprep.subr.mxu0 %v1269
    %v1271 = vand.u32 %v57, 4294901760
    %v1272 = vsub.f32 %v57, %v1271
    %v1273 = vand.u32 %v1272, 4294901760
    %v1274 = vsub.f32 %v1272, %v1273
    %v1275 = vand.u32 %v1274, 4294901760
    %1276 = vmatpush1.msra.mxu0 %v1275
    %v1277 = vand.u32 %v62, 4294901760
    %v1278 = vsub.f32 %v62, %v1277
    %v1279 = vand.u32 %v1278, 4294901760
    %v1280 = vsub.f32 %v1278, %v1279
    %v1281 = vand.u32 %v1280, 4294901760
    %1282 = vmatprep.subr.mxu0 %v1281
    %v1283 = vand.u32 %v61, 4294901760
    %v1284 = vsub.f32 %v61, %v1283
    %v1285 = vand.u32 %v1284, 4294901760
    %v1286 = vsub.f32 %v1284, %v1285
    %v1287 = vand.u32 %v1286, 4294901760
    %1288 = vmatpush1.msra.mxu0 %v1287
    %v1289 = vand.u32 %v66, 4294901760
    %v1290 = vsub.f32 %v66, %v1289
    %v1291 = vand.u32 %v1290, 4294901760
    %v1292 = vsub.f32 %v1290, %v1291
    %v1293 = vand.u32 %v1292, 4294901760
    %1294 = vmatprep.subr.mxu0 %v1293
    %v1295 = vand.u32 %v65, 4294901760
    %v1296 = vsub.f32 %v65, %v1295
    %v1297 = vand.u32 %v1296, 4294901760
    %v1298 = vsub.f32 %v1296, %v1297
    %v1299 = vand.u32 %v1298, 4294901760
    %1300 = vmatpush1.msra.mxu0 %v1299
    %v1301 = vand.u32 %v70, 4294901760
    %v1302 = vsub.f32 %v70, %v1301
    %v1303 = vand.u32 %v1302, 4294901760
    %v1304 = vsub.f32 %v1302, %v1303
    %v1305 = vand.u32 %v1304, 4294901760
    %1306 = vmatprep.subr.mxu0 %v1305
    %v1307 = vand.u32 %v69, 4294901760
    %v1308 = vsub.f32 %v69, %v1307
    %v1309 = vand.u32 %v1308, 4294901760
    %v1310 = vsub.f32 %v1308, %v1309
    %v1311 = vand.u32 %v1310, 4294901760
    %1312 = vmatpush1.msra.mxu0 %v1311
    %v1313 = vand.u32 %v74, 4294901760
    %v1314 = vsub.f32 %v74, %v1313
    %v1315 = vand.u32 %v1314, 4294901760
    %v1316 = vsub.f32 %v1314, %v1315
    %v1317 = vand.u32 %v1316, 4294901760
    %1318 = vmatprep.subr.mxu0 %v1317
    %v1319 = vand.u32 %v73, 4294901760
    %v1320 = vsub.f32 %v73, %v1319
    %v1321 = vand.u32 %v1320, 4294901760
    %v1322 = vsub.f32 %v1320, %v1321
    %v1323 = vand.u32 %v1322, 4294901760
    %1324 = vmatpush1.msra.mxu0 %v1323
    %v1325 = vand.u32 %v78, 4294901760
    %v1326 = vsub.f32 %v78, %v1325
    %v1327 = vand.u32 %v1326, 4294901760
    %v1328 = vsub.f32 %v1326, %v1327
    %v1329 = vand.u32 %v1328, 4294901760
    %1330 = vmatprep.subr.mxu0 %v1329
    %v1331 = vand.u32 %v77, 4294901760
    %v1332 = vsub.f32 %v77, %v1331
    %v1333 = vand.u32 %v1332, 4294901760
    %v1334 = vsub.f32 %v1332, %v1333
    %v1335 = vand.u32 %v1334, 4294901760
    %1336 = vmatpush1.msra.mxu0 %v1335
    %v1337 = vand.u32 %v82, 4294901760
    %v1338 = vsub.f32 %v82, %v1337
    %v1339 = vand.u32 %v1338, 4294901760
    %v1340 = vsub.f32 %v1338, %v1339
    %v1341 = vand.u32 %v1340, 4294901760
    %1342 = vmatprep.subr.mxu0 %v1341
    %v1343 = vand.u32 %v81, 4294901760
    %v1344 = vsub.f32 %v81, %v1343
    %v1345 = vand.u32 %v1344, 4294901760
    %v1346 = vsub.f32 %v1344, %v1345
    %v1347 = vand.u32 %v1346, 4294901760
    %1348 = vmatpush1.msra.mxu0 %v1347
    %v1349 = vand.u32 %v86, 4294901760
    %v1350 = vsub.f32 %v86, %v1349
    %v1351 = vand.u32 %v1350, 4294901760
    %v1352 = vsub.f32 %v1350, %v1351
    %v1353 = vand.u32 %v1352, 4294901760
    %1354 = vmatprep.subr.mxu0 %v1353
    %v1355 = vand.u32 %v85, 4294901760
    %v1356 = vsub.f32 %v85, %v1355
    %v1357 = vand.u32 %v1356, 4294901760
    %v1358 = vsub.f32 %v1356, %v1357
    %v1359 = vand.u32 %v1358, 4294901760
    %1360 = vmatpush1.msra.mxu0 %v1359
    %v1361 = vand.u32 %v90, 4294901760
    %v1362 = vsub.f32 %v90, %v1361
    %v1363 = vand.u32 %v1362, 4294901760
    %v1364 = vsub.f32 %v1362, %v1363
    %v1365 = vand.u32 %v1364, 4294901760
    %1366 = vmatprep.subr.mxu0 %v1365
    %v1367 = vand.u32 %v89, 4294901760
    %v1368 = vsub.f32 %v89, %v1367
    %v1369 = vand.u32 %v1368, 4294901760
    %v1370 = vsub.f32 %v1368, %v1369
    %v1371 = vand.u32 %v1370, 4294901760
    %1372 = vmatpush1.msra.mxu0 %v1371
    %v1373 = vand.u32 %v94, 4294901760
    %v1374 = vsub.f32 %v94, %v1373
    %v1375 = vand.u32 %v1374, 4294901760
    %v1376 = vsub.f32 %v1374, %v1375
    %v1377 = vand.u32 %v1376, 4294901760
    %1378 = vmatprep.subr.mxu0 %v1377
    %v1379 = vand.u32 %v93, 4294901760
    %v1380 = vsub.f32 %v93, %v1379
    %v1381 = vand.u32 %v1380, 4294901760
    %v1382 = vsub.f32 %v1380, %v1381
    %v1383 = vand.u32 %v1382, 4294901760
    %1384 = vmatpush1.msra.mxu0 %v1383
    %v1385 = vand.u32 %v98, 4294901760
    %v1386 = vsub.f32 %v98, %v1385
    %v1387 = vand.u32 %v1386, 4294901760
    %v1388 = vsub.f32 %v1386, %v1387
    %v1389 = vand.u32 %v1388, 4294901760
    %1390 = vmatprep.subr.mxu0 %v1389
    %v1391 = vand.u32 %v97, 4294901760
    %v1392 = vsub.f32 %v97, %v1391
    %v1393 = vand.u32 %v1392, 4294901760
    %v1394 = vsub.f32 %v1392, %v1393
    %v1395 = vand.u32 %v1394, 4294901760
    %1396 = vmatpush1.msra.mxu0 %v1395
    %v1397 = vand.u32 %v102, 4294901760
    %v1398 = vsub.f32 %v102, %v1397
    %v1399 = vand.u32 %v1398, 4294901760
    %v1400 = vsub.f32 %v1398, %v1399
    %v1401 = vand.u32 %v1400, 4294901760
    %1402 = vmatprep.subr.mxu0 %v1401
    %v1403 = vand.u32 %v101, 4294901760
    %v1404 = vsub.f32 %v101, %v1403
    %v1405 = vand.u32 %v1404, 4294901760
    %v1406 = vsub.f32 %v1404, %v1405
    %v1407 = vand.u32 %v1406, 4294901760
    %1408 = vmatpush1.msra.mxu0 %v1407
    %v1409 = vand.u32 %v106, 4294901760
    %v1410 = vsub.f32 %v106, %v1409
    %v1411 = vand.u32 %v1410, 4294901760
    %v1412 = vsub.f32 %v1410, %v1411
    %v1413 = vand.u32 %v1412, 4294901760
    %1414 = vmatprep.subr.mxu0 %v1413
    %v1415 = vand.u32 %v105, 4294901760
    %v1416 = vsub.f32 %v105, %v1415
    %v1417 = vand.u32 %v1416, 4294901760
    %v1418 = vsub.f32 %v1416, %v1417
    %v1419 = vand.u32 %v1418, 4294901760
    %1420 = vmatpush1.msra.mxu0 %v1419
    %v1421 = vand.u32 %v110, 4294901760
    %v1422 = vsub.f32 %v110, %v1421
    %v1423 = vand.u32 %v1422, 4294901760
    %v1424 = vsub.f32 %v1422, %v1423
    %v1425 = vand.u32 %v1424, 4294901760
    %1426 = vmatprep.subr.mxu0 %v1425
    %v1427 = vand.u32 %v109, 4294901760
    %v1428 = vsub.f32 %v109, %v1427
    %v1429 = vand.u32 %v1428, 4294901760
    %v1430 = vsub.f32 %v1428, %v1429
    %v1431 = vand.u32 %v1430, 4294901760
    %1432 = vmatpush1.msra.mxu0 %v1431
    %v1433 = vand.u32 %v114, 4294901760
    %v1434 = vsub.f32 %v114, %v1433
    %v1435 = vand.u32 %v1434, 4294901760
    %v1436 = vsub.f32 %v1434, %v1435
    %v1437 = vand.u32 %v1436, 4294901760
    %1438 = vmatprep.subr.mxu0 %v1437
    %v1439 = vand.u32 %v113, 4294901760
    %v1440 = vsub.f32 %v113, %v1439
    %v1441 = vand.u32 %v1440, 4294901760
    %v1442 = vsub.f32 %v1440, %v1441
    %v1443 = vand.u32 %v1442, 4294901760
    %1444 = vmatpush1.msra.mxu0 %v1443
    %v1445 = vand.u32 %v118, 4294901760
    %v1446 = vsub.f32 %v118, %v1445
    %v1447 = vand.u32 %v1446, 4294901760
    %v1448 = vsub.f32 %v1446, %v1447
    %v1449 = vand.u32 %v1448, 4294901760
    %1450 = vmatprep.subr.mxu0 %v1449
    %v1451 = vand.u32 %v117, 4294901760
    %v1452 = vsub.f32 %v117, %v1451
    %v1453 = vand.u32 %v1452, 4294901760
    %v1454 = vsub.f32 %v1452, %v1453
    %v1455 = vand.u32 %v1454, 4294901760
    %1456 = vmatpush1.msra.mxu0 %v1455
    %1457 = vmatprep.subr.mxu0 0.0
    %1458 = vmatpush1.msra.mxu0 0.0
    %1459 = vmatprep.subr.mxu0 0.0
    %1460 = vmatpush1.msra.mxu0 0.0
    %1461 = vmatprep.subr.mxu0 0.0
    %1462 = vmatpush1.msra.mxu0 0.0
    %1463 = vmatprep.subr.mxu0 0.0
    %1464 = vmatpush1.msra.mxu0 0.0
    %1465 = vmatprep.subr.mxu0 0.0
    %1466 = vmatpush1.msra.mxu0 0.0
    %1467 = vmatprep.subr.mxu0 0.0
    %1468 = vmatpush1.msra.mxu0 0.0
    %1469 = vmatprep.subr.mxu0 0.0
    %1470 = vmatpush1.msra.mxu0 0.0
    %1471 = vmatprep.subr.mxu0 0.0
    %1472 = vmatpush1.msra.mxu0 0.0
    %1473 = vmatprep.subr.mxu0 0.0
    %1474 = vmatpush1.msra.mxu0 0.0
    %1475 = vmatprep.subr.mxu0 0.0
    %1476 = vmatpush1.msra.mxu0 0.0
    %1477 = vmatprep.subr.mxu0 0.0
    %1478 = vmatpush1.msra.mxu0 0.0
    %1479 = vmatprep.subr.mxu0 0.0
    %1480 = vmatpush1.msra.mxu0 0.0
    %v1481 = vand.u32 %v122, 4294901760
    %1482 = vmatprep.mubr.f32.mxu0 %v1481
    %v1483 = vand.u32 %v38, 4294901760
    %1484 = vmatmul.mubr.f32.gmra.mrb[0].mxu0 %v1483
    %v1485 = vpop.f32.mrb[0].mxu0
    %v1486 = vadd.f32 %v1213, %v1485
    %v1487 = vpop.f32.mrb[0].mxu0
    %v1488 = vadd.f32 %v1215, %v1487
    %1489 = vdwg.mxu0
    %v1490 = vand.u32 %v42, 4294901760
    %v1491 = vsub.f32 %v42, %v1490
    %1492 = vmatprep.subr.mxu0 %v1491
    %v1493 = vand.u32 %v41, 4294901760
    %v1494 = vsub.f32 %v41, %v1493
    %1495 = vmatpush1.msra.mxu0 %v1494
    %v1496 = vand.u32 %v46, 4294901760
    %v1497 = vsub.f32 %v46, %v1496
    %1498 = vmatprep.subr.mxu0 %v1497
    %v1499 = vand.u32 %v45, 4294901760
    %v1500 = vsub.f32 %v45, %v1499
    %1501 = vmatpush1.msra.mxu0 %v1500
    %v1502 = vand.u32 %v50, 4294901760
    %v1503 = vsub.f32 %v50, %v1502
    %1504 = vmatprep.subr.mxu0 %v1503
    %v1505 = vand.u32 %v49, 4294901760
    %v1506 = vsub.f32 %v49, %v1505
    %1507 = vmatpush1.msra.mxu0 %v1506
    %v1508 = vand.u32 %v54, 4294901760
    %v1509 = vsub.f32 %v54, %v1508
    %1510 = vmatprep.subr.mxu0 %v1509
    %v1511 = vand.u32 %v53, 4294901760
    %v1512 = vsub.f32 %v53, %v1511
    %1513 = vmatpush1.msra.mxu0 %v1512
    %v1514 = vand.u32 %v58, 4294901760
    %v1515 = vsub.f32 %v58, %v1514
    %1516 = vmatprep.subr.mxu0 %v1515
    %v1517 = vand.u32 %v57, 4294901760
    %v1518 = vsub.f32 %v57, %v1517
    %1519 = vmatpush1.msra.mxu0 %v1518
    %v1520 = vand.u32 %v62, 4294901760
    %v1521 = vsub.f32 %v62, %v1520
    %1522 = vmatprep.subr.mxu0 %v1521
    %v1523 = vand.u32 %v61, 4294901760
    %v1524 = vsub.f32 %v61, %v1523
    %1525 = vmatpush1.msra.mxu0 %v1524
    %v1526 = vand.u32 %v66, 4294901760
    %v1527 = vsub.f32 %v66, %v1526
    %1528 = vmatprep.subr.mxu0 %v1527
    %v1529 = vand.u32 %v65, 4294901760
    %v1530 = vsub.f32 %v65, %v1529
    %1531 = vmatpush1.msra.mxu0 %v1530
    %v1532 = vand.u32 %v70, 4294901760
    %v1533 = vsub.f32 %v70, %v1532
    %1534 = vmatprep.subr.mxu0 %v1533
    %v1535 = vand.u32 %v69, 4294901760
    %v1536 = vsub.f32 %v69, %v1535
    %1537 = vmatpush1.msra.mxu0 %v1536
    %v1538 = vand.u32 %v74, 4294901760
    %v1539 = vsub.f32 %v74, %v1538
    %1540 = vmatprep.subr.mxu0 %v1539
    %v1541 = vand.u32 %v73, 4294901760
    %v1542 = vsub.f32 %v73, %v1541
    %1543 = vmatpush1.msra.mxu0 %v1542
    %v1544 = vand.u32 %v78, 4294901760
    %v1545 = vsub.f32 %v78, %v1544
    %1546 = vmatprep.subr.mxu0 %v1545
    %v1547 = vand.u32 %v77, 4294901760
    %v1548 = vsub.f32 %v77, %v1547
    %1549 = vmatpush1.msra.mxu0 %v1548
    %v1550 = vand.u32 %v82, 4294901760
    %v1551 = vsub.f32 %v82, %v1550
    %1552 = vmatprep.subr.mxu0 %v1551
    %v1553 = vand.u32 %v81, 4294901760
    %v1554 = vsub.f32 %v81, %v1553
    %1555 = vmatpush1.msra.mxu0 %v1554
    %v1556 = vand.u32 %v86, 4294901760
    %v1557 = vsub.f32 %v86, %v1556
    %1558 = vmatprep.subr.mxu0 %v1557
    %v1559 = vand.u32 %v85, 4294901760
    %v1560 = vsub.f32 %v85, %v1559
    %1561 = vmatpush1.msra.mxu0 %v1560
    %v1562 = vand.u32 %v90, 4294901760
    %v1563 = vsub.f32 %v90, %v1562
    %1564 = vmatprep.subr.mxu0 %v1563
    %v1565 = vand.u32 %v89, 4294901760
    %v1566 = vsub.f32 %v89, %v1565
    %1567 = vmatpush1.msra.mxu0 %v1566
    %v1568 = vand.u32 %v94, 4294901760
    %v1569 = vsub.f32 %v94, %v1568
    %1570 = vmatprep.subr.mxu0 %v1569
    %v1571 = vand.u32 %v93, 4294901760
    %v1572 = vsub.f32 %v93, %v1571
    %1573 = vmatpush1.msra.mxu0 %v1572
    %v1574 = vand.u32 %v98, 4294901760
    %v1575 = vsub.f32 %v98, %v1574
    %1576 = vmatprep.subr.mxu0 %v1575
    %v1577 = vand.u32 %v97, 4294901760
    %v1578 = vsub.f32 %v97, %v1577
    %1579 = vmatpush1.msra.mxu0 %v1578
    %v1580 = vand.u32 %v102, 4294901760
    %v1581 = vsub.f32 %v102, %v1580
    %1582 = vmatprep.subr.mxu0 %v1581
    %v1583 = vand.u32 %v101, 4294901760
    %v1584 = vsub.f32 %v101, %v1583
    %1585 = vmatpush1.msra.mxu0 %v1584
    %v1586 = vand.u32 %v106, 4294901760
    %v1587 = vsub.f32 %v106, %v1586
    %1588 = vmatprep.subr.mxu0 %v1587
    %v1589 = vand.u32 %v105, 4294901760
    %v1590 = vsub.f32 %v105, %v1589
    %1591 = vmatpush1.msra.mxu0 %v1590
    %v1592 = vand.u32 %v110, 4294901760
    %v1593 = vsub.f32 %v110, %v1592
    %1594 = vmatprep.subr.mxu0 %v1593
    %v1595 = vand.u32 %v109, 4294901760
    %v1596 = vsub.f32 %v109, %v1595
    %1597 = vmatpush1.msra.mxu0 %v1596
    %v1598 = vand.u32 %v114, 4294901760
    %v1599 = vsub.f32 %v114, %v1598
    %1600 = vmatprep.subr.mxu0 %v1599
    %v1601 = vand.u32 %v113, 4294901760
    %v1602 = vsub.f32 %v113, %v1601
    %1603 = vmatpush1.msra.mxu0 %v1602
    %v1604 = vand.u32 %v118, 4294901760
    %v1605 = vsub.f32 %v118, %v1604
    %1606 = vmatprep.subr.mxu0 %v1605
    %v1607 = vand.u32 %v117, 4294901760
    %v1608 = vsub.f32 %v117, %v1607
    %1609 = vmatpush1.msra.mxu0 %v1608
    %1610 = vmatprep.subr.mxu0 0.0
    %1611 = vmatpush1.msra.mxu0 0.0
    %1612 = vmatprep.subr.mxu0 0.0
    %1613 = vmatpush1.msra.mxu0 0.0
    %1614 = vmatprep.subr.mxu0 0.0
    %1615 = vmatpush1.msra.mxu0 0.0
    %1616 = vmatprep.subr.mxu0 0.0
    %1617 = vmatpush1.msra.mxu0 0.0
    %1618 = vmatprep.subr.mxu0 0.0
    %1619 = vmatpush1.msra.mxu0 0.0
    %1620 = vmatprep.subr.mxu0 0.0
    %1621 = vmatpush1.msra.mxu0 0.0
    %1622 = vmatprep.subr.mxu0 0.0
    %1623 = vmatpush1.msra.mxu0 0.0
    %1624 = vmatprep.subr.mxu0 0.0
    %1625 = vmatpush1.msra.mxu0 0.0
    %1626 = vmatprep.subr.mxu0 0.0
    %1627 = vmatpush1.msra.mxu0 0.0
    %1628 = vmatprep.subr.mxu0 0.0
    %1629 = vmatpush1.msra.mxu0 0.0
    %1630 = vmatprep.subr.mxu0 0.0
    %1631 = vmatpush1.msra.mxu0 0.0
    %1632 = vmatprep.subr.mxu0 0.0
    %1633 = vmatpush1.msra.mxu0 0.0
    %v1634 = vand.u32 %v122, 4294901760
    %v1635 = vsub.f32 %v122, %v1634
    %1636 = vmatprep.mubr.f32.mxu0 %v1635
    %v1637 = vand.u32 %v38, 4294901760
    %v1638 = vsub.f32 %v38, %v1637
    %1639 = vmatmul.mubr.f32.gmra.mrb[0].mxu0 %v1638
    %v1640 = vpop.f32.mrb[0].mxu0
    %v1641 = vadd.f32 %v1486, %v1640
    %v1642 = vpop.f32.mrb[0].mxu0
    %v1643 = vadd.f32 %v1488, %v1642
    %1644 = vdwg.mxu0
    %v1645 = vand.u32 %v42, 4294901760
    %1646 = vmatprep.subr.mxu0 %v1645
    %v1647 = vand.u32 %v41, 4294901760
    %1648 = vmatpush1.msra.mxu0 %v1647
    %v1649 = vand.u32 %v46, 4294901760
    %1650 = vmatprep.subr.mxu0 %v1649
    %v1651 = vand.u32 %v45, 4294901760
    %1652 = vmatpush1.msra.mxu0 %v1651
    %v1653 = vand.u32 %v50, 4294901760
    %1654 = vmatprep.subr.mxu0 %v1653
    %v1655 = vand.u32 %v49, 4294901760
    %1656 = vmatpush1.msra.mxu0 %v1655
    %v1657 = vand.u32 %v54, 4294901760
    %1658 = vmatprep.subr.mxu0 %v1657
    %v1659 = vand.u32 %v53, 4294901760
    %1660 = vmatpush1.msra.mxu0 %v1659
    %v1661 = vand.u32 %v58, 4294901760
    %1662 = vmatprep.subr.mxu0 %v1661
    %v1663 = vand.u32 %v57, 4294901760
    %1664 = vmatpush1.msra.mxu0 %v1663
    %v1665 = vand.u32 %v62, 4294901760
    %1666 = vmatprep.subr.mxu0 %v1665
    %v1667 = vand.u32 %v61, 4294901760
    %1668 = vmatpush1.msra.mxu0 %v1667
    %v1669 = vand.u32 %v66, 4294901760
    %1670 = vmatprep.subr.mxu0 %v1669
    %v1671 = vand.u32 %v65, 4294901760
    %1672 = vmatpush1.msra.mxu0 %v1671
    %v1673 = vand.u32 %v70, 4294901760
    %1674 = vmatprep.subr.mxu0 %v1673
    %v1675 = vand.u32 %v69, 4294901760
    %1676 = vmatpush1.msra.mxu0 %v1675
    %v1677 = vand.u32 %v74, 4294901760
    %1678 = vmatprep.subr.mxu0 %v1677
    %v1679 = vand.u32 %v73, 4294901760
    %1680 = vmatpush1.msra.mxu0 %v1679
    %v1681 = vand.u32 %v78, 4294901760
    %1682 = vmatprep.subr.mxu0 %v1681
    %v1683 = vand.u32 %v77, 4294901760
    %1684 = vmatpush1.msra.mxu0 %v1683
    %v1685 = vand.u32 %v82, 4294901760
    %1686 = vmatprep.subr.mxu0 %v1685
    %v1687 = vand.u32 %v81, 4294901760
    %1688 = vmatpush1.msra.mxu0 %v1687
    %v1689 = vand.u32 %v86, 4294901760
    %1690 = vmatprep.subr.mxu0 %v1689
    %v1691 = vand.u32 %v85, 4294901760
    %1692 = vmatpush1.msra.mxu0 %v1691
    %v1693 = vand.u32 %v90, 4294901760
    %1694 = vmatprep.subr.mxu0 %v1693
    %v1695 = vand.u32 %v89, 4294901760
    %1696 = vmatpush1.msra.mxu0 %v1695
    %v1697 = vand.u32 %v94, 4294901760
    %1698 = vmatprep.subr.mxu0 %v1697
    %v1699 = vand.u32 %v93, 4294901760
    %1700 = vmatpush1.msra.mxu0 %v1699
    %v1701 = vand.u32 %v98, 4294901760
    %1702 = vmatprep.subr.mxu0 %v1701
    %v1703 = vand.u32 %v97, 4294901760
    %1704 = vmatpush1.msra.mxu0 %v1703
    %v1705 = vand.u32 %v102, 4294901760
    %1706 = vmatprep.subr.mxu0 %v1705
    %v1707 = vand.u32 %v101, 4294901760
    %1708 = vmatpush1.msra.mxu0 %v1707
    %v1709 = vand.u32 %v106, 4294901760
    %1710 = vmatprep.subr.mxu0 %v1709
    %v1711 = vand.u32 %v105, 4294901760
    %1712 = vmatpush1.msra.mxu0 %v1711
    %v1713 = vand.u32 %v110, 4294901760
    %1714 = vmatprep.subr.mxu0 %v1713
    %v1715 = vand.u32 %v109, 4294901760
    %1716 = vmatpush1.msra.mxu0 %v1715
    %v1717 = vand.u32 %v114, 4294901760
    %1718 = vmatprep.subr.mxu0 %v1717
    %v1719 = vand.u32 %v113, 4294901760
    %1720 = vmatpush1.msra.mxu0 %v1719
    %v1721 = vand.u32 %v118, 4294901760
    %1722 = vmatprep.subr.mxu0 %v1721
    %v1723 = vand.u32 %v117, 4294901760
    %1724 = vmatpush1.msra.mxu0 %v1723
    %1725 = vmatprep.subr.mxu0 0.0
    %1726 = vmatpush1.msra.mxu0 0.0
    %1727 = vmatprep.subr.mxu0 0.0
    %1728 = vmatpush1.msra.mxu0 0.0
    %1729 = vmatprep.subr.mxu0 0.0
    %1730 = vmatpush1.msra.mxu0 0.0
    %1731 = vmatprep.subr.mxu0 0.0
    %1732 = vmatpush1.msra.mxu0 0.0
    %1733 = vmatprep.subr.mxu0 0.0
    %1734 = vmatpush1.msra.mxu0 0.0
    %1735 = vmatprep.subr.mxu0 0.0
    %1736 = vmatpush1.msra.mxu0 0.0
    %1737 = vmatprep.subr.mxu0 0.0
    %1738 = vmatpush1.msra.mxu0 0.0
    %1739 = vmatprep.subr.mxu0 0.0
    %1740 = vmatpush1.msra.mxu0 0.0
    %1741 = vmatprep.subr.mxu0 0.0
    %1742 = vmatpush1.msra.mxu0 0.0
    %1743 = vmatprep.subr.mxu0 0.0
    %1744 = vmatpush1.msra.mxu0 0.0
    %1745 = vmatprep.subr.mxu0 0.0
    %1746 = vmatpush1.msra.mxu0 0.0
    %1747 = vmatprep.subr.mxu0 0.0
    %1748 = vmatpush1.msra.mxu0 0.0
    %v1749 = vand.u32 %v122, 4294901760
    %v1750 = vsub.f32 %v122, %v1749
    %v1751 = vand.u32 %v1750, 4294901760
    %1752 = vmatprep.mubr.f32.mxu0 %v1751
    %v1753 = vand.u32 %v38, 4294901760
    %v1754 = vsub.f32 %v38, %v1753
    %v1755 = vand.u32 %v1754, 4294901760
    %1756 = vmatmul.mubr.f32.gmra.mrb[0].mxu0 %v1755
    %v1757 = vpop.f32.mrb[0].mxu0
    %v1758 = vadd.f32 %v1641, %v1757
    %v1759 = vpop.f32.mrb[0].mxu0
    %v1760 = vadd.f32 %v1643, %v1759
    %1761 = vdwg.mxu0
    %v1762 = vand.u32 %v42, 4294901760
    %v1763 = vsub.f32 %v42, %v1762
    %v1764 = vand.u32 %v1763, 4294901760
    %1765 = vmatprep.subr.mxu0 %v1764
    %v1766 = vand.u32 %v41, 4294901760
    %v1767 = vsub.f32 %v41, %v1766
    %v1768 = vand.u32 %v1767, 4294901760
    %1769 = vmatpush1.msra.mxu0 %v1768
    %v1770 = vand.u32 %v46, 4294901760
    %v1771 = vsub.f32 %v46, %v1770
    %v1772 = vand.u32 %v1771, 4294901760
    %1773 = vmatprep.subr.mxu0 %v1772
    %v1774 = vand.u32 %v45, 4294901760
    %v1775 = vsub.f32 %v45, %v1774
    %v1776 = vand.u32 %v1775, 4294901760
    %1777 = vmatpush1.msra.mxu0 %v1776
    %v1778 = vand.u32 %v50, 4294901760
    %v1779 = vsub.f32 %v50, %v1778
    %v1780 = vand.u32 %v1779, 4294901760
    %1781 = vmatprep.subr.mxu0 %v1780
    %v1782 = vand.u32 %v49, 4294901760
    %v1783 = vsub.f32 %v49, %v1782
    %v1784 = vand.u32 %v1783, 4294901760
    %1785 = vmatpush1.msra.mxu0 %v1784
    %v1786 = vand.u32 %v54, 4294901760
    %v1787 = vsub.f32 %v54, %v1786
    %v1788 = vand.u32 %v1787, 4294901760
    %1789 = vmatprep.subr.mxu0 %v1788
    %v1790 = vand.u32 %v53, 4294901760
    %v1791 = vsub.f32 %v53, %v1790
    %v1792 = vand.u32 %v1791, 4294901760
    %1793 = vmatpush1.msra.mxu0 %v1792
    %v1794 = vand.u32 %v58, 4294901760
    %v1795 = vsub.f32 %v58, %v1794
    %v1796 = vand.u32 %v1795, 4294901760
    %1797 = vmatprep.subr.mxu0 %v1796
    %v1798 = vand.u32 %v57, 4294901760
    %v1799 = vsub.f32 %v57, %v1798
    %v1800 = vand.u32 %v1799, 4294901760
    %1801 = vmatpush1.msra.mxu0 %v1800
    %v1802 = vand.u32 %v62, 4294901760
    %v1803 = vsub.f32 %v62, %v1802
    %v1804 = vand.u32 %v1803, 4294901760
    %1805 = vmatprep.subr.mxu0 %v1804
    %v1806 = vand.u32 %v61, 4294901760
    %v1807 = vsub.f32 %v61, %v1806
    %v1808 = vand.u32 %v1807, 4294901760
    %1809 = vmatpush1.msra.mxu0 %v1808
    %v1810 = vand.u32 %v66, 4294901760
    %v1811 = vsub.f32 %v66, %v1810
    %v1812 = vand.u32 %v1811, 4294901760
    %1813 = vmatprep.subr.mxu0 %v1812
    %v1814 = vand.u32 %v65, 4294901760
    %v1815 = vsub.f32 %v65, %v1814
    %v1816 = vand.u32 %v1815, 4294901760
    %1817 = vmatpush1.msra.mxu0 %v1816
    %v1818 = vand.u32 %v70, 4294901760
    %v1819 = vsub.f32 %v70, %v1818
    %v1820 = vand.u32 %v1819, 4294901760
    %1821 = vmatprep.subr.mxu0 %v1820
    %v1822 = vand.u32 %v69, 4294901760
    %v1823 = vsub.f32 %v69, %v1822
    %v1824 = vand.u32 %v1823, 4294901760
    %1825 = vmatpush1.msra.mxu0 %v1824
    %v1826 = vand.u32 %v74, 4294901760
    %v1827 = vsub.f32 %v74, %v1826
    %v1828 = vand.u32 %v1827, 4294901760
    %1829 = vmatprep.subr.mxu0 %v1828
    %v1830 = vand.u32 %v73, 4294901760
    %v1831 = vsub.f32 %v73, %v1830
    %v1832 = vand.u32 %v1831, 4294901760
    %1833 = vmatpush1.msra.mxu0 %v1832
    %v1834 = vand.u32 %v78, 4294901760
    %v1835 = vsub.f32 %v78, %v1834
    %v1836 = vand.u32 %v1835, 4294901760
    %1837 = vmatprep.subr.mxu0 %v1836
    %v1838 = vand.u32 %v77, 4294901760
    %v1839 = vsub.f32 %v77, %v1838
    %v1840 = vand.u32 %v1839, 4294901760
    %1841 = vmatpush1.msra.mxu0 %v1840
    %v1842 = vand.u32 %v82, 4294901760
    %v1843 = vsub.f32 %v82, %v1842
    %v1844 = vand.u32 %v1843, 4294901760
    %1845 = vmatprep.subr.mxu0 %v1844
    %v1846 = vand.u32 %v81, 4294901760
    %v1847 = vsub.f32 %v81, %v1846
    %v1848 = vand.u32 %v1847, 4294901760
    %1849 = vmatpush1.msra.mxu0 %v1848
    %v1850 = vand.u32 %v86, 4294901760
    %v1851 = vsub.f32 %v86, %v1850
    %v1852 = vand.u32 %v1851, 4294901760
    %1853 = vmatprep.subr.mxu0 %v1852
    %v1854 = vand.u32 %v85, 4294901760
    %v1855 = vsub.f32 %v85, %v1854
    %v1856 = vand.u32 %v1855, 4294901760
    %1857 = vmatpush1.msra.mxu0 %v1856
    %v1858 = vand.u32 %v90, 4294901760
    %v1859 = vsub.f32 %v90, %v1858
    %v1860 = vand.u32 %v1859, 4294901760
    %1861 = vmatprep.subr.mxu0 %v1860
    %v1862 = vand.u32 %v89, 4294901760
    %v1863 = vsub.f32 %v89, %v1862
    %v1864 = vand.u32 %v1863, 4294901760
    %1865 = vmatpush1.msra.mxu0 %v1864
    %v1866 = vand.u32 %v94, 4294901760
    %v1867 = vsub.f32 %v94, %v1866
    %v1868 = vand.u32 %v1867, 4294901760
    %1869 = vmatprep.subr.mxu0 %v1868
    %v1870 = vand.u32 %v93, 4294901760
    %v1871 = vsub.f32 %v93, %v1870
    %v1872 = vand.u32 %v1871, 4294901760
    %1873 = vmatpush1.msra.mxu0 %v1872
    %v1874 = vand.u32 %v98, 4294901760
    %v1875 = vsub.f32 %v98, %v1874
    %v1876 = vand.u32 %v1875, 4294901760
    %1877 = vmatprep.subr.mxu0 %v1876
    %v1878 = vand.u32 %v97, 4294901760
    %v1879 = vsub.f32 %v97, %v1878
    %v1880 = vand.u32 %v1879, 4294901760
    %1881 = vmatpush1.msra.mxu0 %v1880
    %v1882 = vand.u32 %v102, 4294901760
    %v1883 = vsub.f32 %v102, %v1882
    %v1884 = vand.u32 %v1883, 4294901760
    %1885 = vmatprep.subr.mxu0 %v1884
    %v1886 = vand.u32 %v101, 4294901760
    %v1887 = vsub.f32 %v101, %v1886
    %v1888 = vand.u32 %v1887, 4294901760
    %1889 = vmatpush1.msra.mxu0 %v1888
    %v1890 = vand.u32 %v106, 4294901760
    %v1891 = vsub.f32 %v106, %v1890
    %v1892 = vand.u32 %v1891, 4294901760
    %1893 = vmatprep.subr.mxu0 %v1892
    %v1894 = vand.u32 %v105, 4294901760
    %v1895 = vsub.f32 %v105, %v1894
    %v1896 = vand.u32 %v1895, 4294901760
    %1897 = vmatpush1.msra.mxu0 %v1896
    %v1898 = vand.u32 %v110, 4294901760
    %v1899 = vsub.f32 %v110, %v1898
    %v1900 = vand.u32 %v1899, 4294901760
    %1901 = vmatprep.subr.mxu0 %v1900
    %v1902 = vand.u32 %v109, 4294901760
    %v1903 = vsub.f32 %v109, %v1902
    %v1904 = vand.u32 %v1903, 4294901760
    %1905 = vmatpush1.msra.mxu0 %v1904
    %v1906 = vand.u32 %v114, 4294901760
    %v1907 = vsub.f32 %v114, %v1906
    %v1908 = vand.u32 %v1907, 4294901760
    %1909 = vmatprep.subr.mxu0 %v1908
    %v1910 = vand.u32 %v113, 4294901760
    %v1911 = vsub.f32 %v113, %v1910
    %v1912 = vand.u32 %v1911, 4294901760
    %1913 = vmatpush1.msra.mxu0 %v1912
    %v1914 = vand.u32 %v118, 4294901760
    %v1915 = vsub.f32 %v118, %v1914
    %v1916 = vand.u32 %v1915, 4294901760
    %1917 = vmatprep.subr.mxu0 %v1916
    %v1918 = vand.u32 %v117, 4294901760
    %v1919 = vsub.f32 %v117, %v1918
    %v1920 = vand.u32 %v1919, 4294901760
    %1921 = vmatpush1.msra.mxu0 %v1920
    %1922 = vmatprep.subr.mxu0 0.0
    %1923 = vmatpush1.msra.mxu0 0.0
    %1924 = vmatprep.subr.mxu0 0.0
    %1925 = vmatpush1.msra.mxu0 0.0
    %1926 = vmatprep.subr.mxu0 0.0
    %1927 = vmatpush1.msra.mxu0 0.0
    %1928 = vmatprep.subr.mxu0 0.0
    %1929 = vmatpush1.msra.mxu0 0.0
    %1930 = vmatprep.subr.mxu0 0.0
    %1931 = vmatpush1.msra.mxu0 0.0
    %1932 = vmatprep.subr.mxu0 0.0
    %1933 = vmatpush1.msra.mxu0 0.0
    %1934 = vmatprep.subr.mxu0 0.0
    %1935 = vmatpush1.msra.mxu0 0.0
    %1936 = vmatprep.subr.mxu0 0.0
    %1937 = vmatpush1.msra.mxu0 0.0
    %1938 = vmatprep.subr.mxu0 0.0
    %1939 = vmatpush1.msra.mxu0 0.0
    %1940 = vmatprep.subr.mxu0 0.0
    %1941 = vmatpush1.msra.mxu0 0.0
    %1942 = vmatprep.subr.mxu0 0.0
    %1943 = vmatpush1.msra.mxu0 0.0
    %1944 = vmatprep.subr.mxu0 0.0
    %1945 = vmatpush1.msra.mxu0 0.0
    %v1946 = vand.u32 %v122, 4294901760
    %1947 = vmatprep.mubr.f32.mxu0 %v1946
    %v1948 = vand.u32 %v38, 4294901760
    %1949 = vmatmul.mubr.f32.gmra.mrb[0].mxu0 %v1948
    %v1950 = vpop.f32.mrb[0].mxu0
    %v1951 = vadd.f32 %v1758, %v1950
    %v1952 = vpop.f32.mrb[0].mxu0
    %v1953 = vadd.f32 %v1760, %v1952
    %1954 = vdwg.mxu0
    %v1955 = vand.u32 %v42, 4294901760
    %1956 = vmatprep.subr.mxu0 %v1955
    %v1957 = vand.u32 %v41, 4294901760
    %1958 = vmatpush1.msra.mxu0 %v1957
    %v1959 = vand.u32 %v46, 4294901760
    %1960 = vmatprep.subr.mxu0 %v1959
    %v1961 = vand.u32 %v45, 4294901760
    %1962 = vmatpush1.msra.mxu0 %v1961
    %v1963 = vand.u32 %v50, 4294901760
    %1964 = vmatprep.subr.mxu0 %v1963
    %v1965 = vand.u32 %v49, 4294901760
    %1966 = vmatpush1.msra.mxu0 %v1965
    %v1967 = vand.u32 %v54, 4294901760
    %1968 = vmatprep.subr.mxu0 %v1967
    %v1969 = vand.u32 %v53, 4294901760
    %1970 = vmatpush1.msra.mxu0 %v1969
    %v1971 = vand.u32 %v58, 4294901760
    %1972 = vmatprep.subr.mxu0 %v1971
    %v1973 = vand.u32 %v57, 4294901760
    %1974 = vmatpush1.msra.mxu0 %v1973
    %v1975 = vand.u32 %v62, 4294901760
    %1976 = vmatprep.subr.mxu0 %v1975
    %v1977 = vand.u32 %v61, 4294901760
    %1978 = vmatpush1.msra.mxu0 %v1977
    %v1979 = vand.u32 %v66, 4294901760
    %1980 = vmatprep.subr.mxu0 %v1979
    %v1981 = vand.u32 %v65, 4294901760
    %1982 = vmatpush1.msra.mxu0 %v1981
    %v1983 = vand.u32 %v70, 4294901760
    %1984 = vmatprep.subr.mxu0 %v1983
    %v1985 = vand.u32 %v69, 4294901760
    %1986 = vmatpush1.msra.mxu0 %v1985
    %v1987 = vand.u32 %v74, 4294901760
    %1988 = vmatprep.subr.mxu0 %v1987
    %v1989 = vand.u32 %v73, 4294901760
    %1990 = vmatpush1.msra.mxu0 %v1989
    %v1991 = vand.u32 %v78, 4294901760
    %1992 = vmatprep.subr.mxu0 %v1991
    %v1993 = vand.u32 %v77, 4294901760
    %1994 = vmatpush1.msra.mxu0 %v1993
    %v1995 = vand.u32 %v82, 4294901760
    %1996 = vmatprep.subr.mxu0 %v1995
    %v1997 = vand.u32 %v81, 4294901760
    %1998 = vmatpush1.msra.mxu0 %v1997
    %v1999 = vand.u32 %v86, 4294901760
    %2000 = vmatprep.subr.mxu0 %v1999
    %v2001 = vand.u32 %v85, 4294901760
    %2002 = vmatpush1.msra.mxu0 %v2001
    %v2003 = vand.u32 %v90, 4294901760
    %2004 = vmatprep.subr.mxu0 %v2003
    %v2005 = vand.u32 %v89, 4294901760
    %2006 = vmatpush1.msra.mxu0 %v2005
    %v2007 = vand.u32 %v94, 4294901760
    %2008 = vmatprep.subr.mxu0 %v2007
    %v2009 = vand.u32 %v93, 4294901760
    %2010 = vmatpush1.msra.mxu0 %v2009
    %v2011 = vand.u32 %v98, 4294901760
    %2012 = vmatprep.subr.mxu0 %v2011
    %v2013 = vand.u32 %v97, 4294901760
    %2014 = vmatpush1.msra.mxu0 %v2013
    %v2015 = vand.u32 %v102, 4294901760
    %2016 = vmatprep.subr.mxu0 %v2015
    %v2017 = vand.u32 %v101, 4294901760
    %2018 = vmatpush1.msra.mxu0 %v2017
    %v2019 = vand.u32 %v106, 4294901760
    %2020 = vmatprep.subr.mxu0 %v2019
    %v2021 = vand.u32 %v105, 4294901760
    %2022 = vmatpush1.msra.mxu0 %v2021
    %v2023 = vand.u32 %v110, 4294901760
    %2024 = vmatprep.subr.mxu0 %v2023
    %v2025 = vand.u32 %v109, 4294901760
    %2026 = vmatpush1.msra.mxu0 %v2025
    %v2027 = vand.u32 %v114, 4294901760
    %2028 = vmatprep.subr.mxu0 %v2027
    %v2029 = vand.u32 %v113, 4294901760
    %2030 = vmatpush1.msra.mxu0 %v2029
    %v2031 = vand.u32 %v118, 4294901760
    %2032 = vmatprep.subr.mxu0 %v2031
    %v2033 = vand.u32 %v117, 4294901760
    %2034 = vmatpush1.msra.mxu0 %v2033
    %2035 = vmatprep.subr.mxu0 0.0
    %2036 = vmatpush1.msra.mxu0 0.0
    %2037 = vmatprep.subr.mxu0 0.0
    %2038 = vmatpush1.msra.mxu0 0.0
    %2039 = vmatprep.subr.mxu0 0.0
    %2040 = vmatpush1.msra.mxu0 0.0
    %2041 = vmatprep.subr.mxu0 0.0
    %2042 = vmatpush1.msra.mxu0 0.0
    %2043 = vmatprep.subr.mxu0 0.0
    %2044 = vmatpush1.msra.mxu0 0.0
    %2045 = vmatprep.subr.mxu0 0.0
    %2046 = vmatpush1.msra.mxu0 0.0
    %2047 = vmatprep.subr.mxu0 0.0
    %2048 = vmatpush1.msra.mxu0 0.0
    %2049 = vmatprep.subr.mxu0 0.0
    %2050 = vmatpush1.msra.mxu0 0.0
    %2051 = vmatprep.subr.mxu0 0.0
    %2052 = vmatpush1.msra.mxu0 0.0
    %2053 = vmatprep.subr.mxu0 0.0
    %2054 = vmatpush1.msra.mxu0 0.0
    %2055 = vmatprep.subr.mxu0 0.0
    %2056 = vmatpush1.msra.mxu0 0.0
    %2057 = vmatprep.subr.mxu0 0.0
    %2058 = vmatpush1.msra.mxu0 0.0
    %v2059 = vand.u32 %v122, 4294901760
    %2060 = vmatprep.mubr.f32.mxu0 %v2059
    %v2061 = vand.u32 %v38, 4294901760
    %2062 = vmatmul.mubr.f32.gmra.mrb[0].mxu0 %v2061
    %v2063 = vpop.f32.mrb[0].mxu0
    %v2064 = vadd.f32 %v1951, %v2063
    %v2065 = vpop.f32.mrb[0].mxu0
    %v2066 = vadd.f32 %v1953, %v2065
    %2067 = vdwg.mxu0
    %v2072 = vcombine.low %v1092, %v1094
    %v2073 = vcombine.low %v2064, %v2066
    %2076 = vst [vmem:[#allocation7] sm:$0xff] %v2072
    %2077 = vst [vmem:[#allocation7 + $0x8] sm:$0xff] %v2073
    // Predicated region
    $region18: #{tpu_custom_call.1} parent=1 // pred_check
      _
    $region19: #{tpu_custom_call.1} parent=1 // pred_check_branch
      %2079 = sbr.rel (0) target = $region21
    $region20: #{tpu_custom_call.1} parent=1 // pred_region
      %s2081 = ssub.s32 256, 256
      %2082 = vsyncadd [#allocation4], %s2081
      %s2084 = sshll.u32 [#allocation7], 4
      %s2085 = int_to_ptr.vmem [resolvable:$true] %s2084
      %2087 = dma.vmem_to_hbm [thread:$0]  %s2085, 256, %s2, [#allocation4]
    $region21: #{tpu_custom_call.1} parent=1 // pred_fallthru
      _
    // Predicated region
    $region22: #{tpu_custom_call.1} parent=1 // pred_check
      _
    $region23: #{tpu_custom_call.1} parent=1 // pred_check_branch
      %2089 = sbr.rel (0) target = $region25
    $region24: #{tpu_custom_call.1} parent=1 // pred_region
      %2090 = dma.done [#allocation4], 256
    $region25: #{tpu_custom_call.1} parent=1 // pred_fallthru
      _
    %2091 = vsyncpa [#allocation3], 1
    %2092 = vsyncpa [#allocation6], 1
    %2093 = vsyncpa [#allocation4], 1

</llo_original>
